<compile_context>
chip_gen: v6e
topology: v6e:2x2x1
jax: 0.10.0
libtpu: 0.0.40
codegen_flags: <defaults>
</compile_context>

<pallas_src>
import functools

import jax
import jax.numpy as jnp
from jax.experimental import pallas as pl
from jax.experimental.pallas import tpu as pltpu


# ------------------------------ Fused kernel --------------------------------
def gcn_e_fused_kernel(
    x_ref, adj_ref,
    w1_ref, b1_ref, w2_ref, b2_ref, w3_ref, b3_ref, w4_ref, b4_ref,
    cw1_ref, cb1_ref, alpha_ref, cw2_ref, cb2_ref,
    o_ref,
):
    # x_ref:   (1, N, D)   f32, current batch element
    # adj_ref: (1, N, N)   bf16 (row-normalized mean-aggregation matrix)
    # wK_ref:  (2*din, dout) bf16 concat-form GraphConv weight, bK_ref (1, dout) f32
    # cw*/cb*/alpha: classifier Linear/PReLU params (bf16 weights, f32 bias/alpha)
    # o_ref:   (1, N, C)   f32 classifier logits for this batch element
    adj = adj_ref[0]                       # (N, N) bf16
    x = x_ref[0]                           # (N, D) f32

    def graph_conv(h, w_ref, b_ref):
        # MeanAggregator: row-normalized adjacency times features (MXU).
        agg = jnp.dot(adj, h.astype(jnp.bfloat16),
                      preferred_element_type=jnp.float32)            # (N, din) f32
        # concat([h, agg], -1) @ W  -- single K=2*din matmul on the MXU.
        ha = jnp.concatenate([h, agg], axis=-1).astype(jnp.bfloat16)  # (N, 2*din)
        out = jnp.dot(ha, w_ref[...],
                      preferred_element_type=jnp.float32) + b_ref[...]
        return jnp.maximum(out, 0.0)       # ReLU, f32
        # TODO(synk): dropout=0 in this config; F.dropout omitted (inference path).

    x = graph_conv(x, w1_ref, b1_ref)      # (N, nhid)
    x = graph_conv(x, w2_ref, b2_ref)      # (N, nhid)
    x = graph_conv(x, w3_ref, b3_ref)      # (N, nhid//2)
    x = graph_conv(x, w4_ref, b4_ref)      # (N, nhid//2)

    # Classifier epilogue: Linear -> PReLU -> Linear (weights live in VMEM).
    h = jnp.dot(x.astype(jnp.bfloat16), cw1_ref[...],
                preferred_element_type=jnp.float32) + cb1_ref[...]
    h = jnp.where(h > 0, h, alpha_ref[...] * h)                      # PReLU
    pred = jnp.dot(h.astype(jnp.bfloat16), cw2_ref[...],
                   preferred_element_type=jnp.float32) + cb2_ref[...]
    o_ref[0] = pred


def gcn_e_fused(x, adj_bf16, conv_ws, conv_bs, cw1, cb1, alpha, cw2, cb2):
    B, N, D = x.shape
    C = cw2.shape[1]

    # TODO(synk): for N beyond ~1-1.5k, tile adj rows (BlockSpec (1, TILE_N, N))
    # and raise vmem_limit_bytes; at this size everything fits trivially.
    const2d = lambda shape: pl.BlockSpec(shape, lambda b: (0, 0))

    in_specs = [
        pl.BlockSpec((1, N, D), lambda b: (b, 0, 0)),   # x
        pl.BlockSpec((1, N, N), lambda b: (b, 0, 0)),   # adj
    ]
    args = [x, adj_bf16]
    for w, bias in zip(conv_ws, conv_bs):
        in_specs += [const2d(w.shape), const2d(bias.shape)]
        args += [w, bias]
    in_specs += [const2d(cw1.shape), const2d(cb1.shape), const2d(alpha.shape),
                 const2d(cw2.shape), const2d(cb2.shape)]
    args += [cw1, cb1, alpha, cw2, cb2]

    out = pl.pallas_call(
        gcn_e_fused_kernel,
        out_shape=jax.ShapeDtypeStruct((B, N, C), jnp.float32),
        grid=(B,),
        in_specs=in_specs,
        out_specs=pl.BlockSpec((1, N, C), lambda b: (b, 0, 0)),
        compiler_params=pltpu.CompilerParams(
            dimension_semantics=("parallel",),   # shards over v7x's 2 TCs
        ),
    )(*args)
    return out.reshape(B * N, C)                 # x.view(-1, x.shape[-1]) semantics


# ------------------------------- Parameter init ------------------------------
def xavier_uniform(key, fan_in, fan_out, shape):
    limit = jnp.sqrt(6.0 / (fan_in + fan_out))
    return jax.random.uniform(key, shape, jnp.float32, -limit, limit)


def init_gcn_e_params(key, feature_dim, nhid, nclass):
    nhid_half = nhid // 2
    dims = [(feature_dim, nhid), (nhid, nhid), (nhid, nhid_half),
            (nhid_half, nhid_half)]
    params = {"convs": []}
    keys = jax.random.split(key, len(dims) + 2)
    for k, (din, dout) in zip(keys[:4], dims):
        # GraphConv weight kept in its original (2*din, dout) concat form.
        w = xavier_uniform(k, 2 * din, dout, (2 * din, dout))
        params["convs"].append({
            "w": w,
            "b": jnp.zeros((1, dout), jnp.float32),
        })
    k1, k2 = keys[4], keys[5]
    params["cls"] = {
        "w1": xavier_uniform(k1, nhid_half, nhid_half, (nhid_half, nhid_half)),
        "b1": jnp.zeros((1, nhid_half), jnp.float32),
        "alpha": jnp.full((1, nhid_half), 0.25, jnp.float32),  # PReLU init
        "w2": xavier_uniform(k2, nhid_half, nclass, (nhid_half, nclass)),
        "b2": jnp.zeros((1, nclass), jnp.float32),
    }
    return params


# --------------------------------- Forward ----------------------------------
@functools.partial(jax.jit, static_argnames=())
def gcn_e_forward(params, x, adj):
    # bf16 MXU operands (halves adj HBM traffic); f32 accumulation in-kernel.
    adj_bf16 = adj.astype(jnp.bfloat16)
    conv_ws = [c["w"].astype(jnp.bfloat16) for c in params["convs"]]
    conv_bs = [c["b"] for c in params["convs"]]
    c = params["cls"]
    return gcn_e_fused(
        x, adj_bf16, conv_ws, conv_bs,
        c["w1"].astype(jnp.bfloat16), c["b1"], c["alpha"],
        c["w2"].astype(jnp.bfloat16), c["b2"],
    )


if __name__ == "__main__":
    feature_dim, nhid, nclass = 32, 64, 2
    B, N = 2, 128

    root = jax.random.PRNGKey(0)
    k_params, k_x, k_adj = jax.random.split(root, 3)

    params = init_gcn_e_params(k_params, feature_dim, nhid, nclass)

    x = jax.random.normal(k_x, (B, N, feature_dim), jnp.float32)
    # Row-normalized non-negative adjacency -> mean aggregation.
    adj_raw = jax.random.uniform(k_adj, (B, N, N), jnp.float32)
    adj = adj_raw / jnp.sum(adj_raw, axis=-1, keepdims=True)

    pred = gcn_e_forward(params, x, adj)
    jax.block_until_ready(pred)
    assert pred.shape == (B * N, nclass)
    print("KERNEL_OK")
</pallas_src>

<mosaic_0001>
module attributes {stable_mosaic.version = 11 : i64} {
  func.func @gcn_e_fused_kernel(%arg0: i32, %arg1: memref<1x128x32xf32, #tpu.memory_space<vmem>>, %arg2: memref<1x128x128xbf16, #tpu.memory_space<vmem>>, %arg3: memref<64x64xbf16, #tpu.memory_space<vmem>>, %arg4: memref<1x64xf32, #tpu.memory_space<vmem>>, %arg5: memref<128x64xbf16, #tpu.memory_space<vmem>>, %arg6: memref<1x64xf32, #tpu.memory_space<vmem>>, %arg7: memref<128x32xbf16, #tpu.memory_space<vmem>>, %arg8: memref<1x32xf32, #tpu.memory_space<vmem>>, %arg9: memref<64x32xbf16, #tpu.memory_space<vmem>>, %arg10: memref<1x32xf32, #tpu.memory_space<vmem>>, %arg11: memref<32x32xbf16, #tpu.memory_space<vmem>>, %arg12: memref<1x32xf32, #tpu.memory_space<vmem>>, %arg13: memref<1x32xf32, #tpu.memory_space<vmem>>, %arg14: memref<32x2xbf16, #tpu.memory_space<vmem>>, %arg15: memref<1x2xf32, #tpu.memory_space<vmem>>, %arg16: memref<1x128x2xf32, #tpu.memory_space<vmem>>) attributes {dimension_semantics = [#tpu.dimension_semantics<parallel>], iteration_bounds = array<i64: 2>, scalar_prefetch = 0 : i64, scratch_operands = 0 : i64, tpu.core_type = #tpu.core_type<tc>, window_params = [{transform_indices = @transform_0, window_bounds = array<i64: 1, 128, 32>}, {transform_indices = @transform_1, window_bounds = array<i64: 1, 128, 128>}, {pipeline_mode = #tpu.pipeline_mode<synchronous>, transform_indices = @transform_2, window_bounds = array<i64: 64, 64>}, {pipeline_mode = #tpu.pipeline_mode<synchronous>, transform_indices = @transform_3, window_bounds = array<i64: 1, 64>}, {pipeline_mode = #tpu.pipeline_mode<synchronous>, transform_indices = @transform_4, window_bounds = array<i64: 128, 64>}, {pipeline_mode = #tpu.pipeline_mode<synchronous>, transform_indices = @transform_5, window_bounds = array<i64: 1, 64>}, {pipeline_mode = #tpu.pipeline_mode<synchronous>, transform_indices = @transform_6, window_bounds = array<i64: 128, 32>}, {pipeline_mode = #tpu.pipeline_mode<synchronous>, transform_indices = @transform_7, window_bounds = array<i64: 1, 32>}, {pipeline_mode = #tpu.pipeline_mode<synchronous>, transform_indices = @transform_8, window_bounds = array<i64: 64, 32>}, {pipeline_mode = #tpu.pipeline_mode<synchronous>, transform_indices = @transform_9, window_bounds = array<i64: 1, 32>}, {pipeline_mode = #tpu.pipeline_mode<synchronous>, transform_indices = @transform_10, window_bounds = array<i64: 32, 32>}, {pipeline_mode = #tpu.pipeline_mode<synchronous>, transform_indices = @transform_11, window_bounds = array<i64: 1, 32>}, {pipeline_mode = #tpu.pipeline_mode<synchronous>, transform_indices = @transform_12, window_bounds = array<i64: 1, 32>}, {pipeline_mode = #tpu.pipeline_mode<synchronous>, transform_indices = @transform_13, window_bounds = array<i64: 32, 2>}, {pipeline_mode = #tpu.pipeline_mode<synchronous>, transform_indices = @transform_14, window_bounds = array<i64: 1, 2>}, {transform_indices = @transform_15, window_bounds = array<i64: 1, 128, 2>}]} {
    %c0 = arith.constant 0 : index
    %c0_0 = arith.constant 0 : index
    %c0_1 = arith.constant 0 : index
    %0 = vector.load %arg2[%c0, %c0_0, %c0_1] : memref<1x128x128xbf16, #tpu.memory_space<vmem>>, vector<1x128x128xbf16>
    %1 = vector.shape_cast %0 : vector<1x128x128xbf16> to vector<128x128xbf16>
    %c0_2 = arith.constant 0 : index
    %c0_3 = arith.constant 0 : index
    %c0_4 = arith.constant 0 : index
    %2 = vector.load %arg1[%c0_2, %c0_3, %c0_4] : memref<1x128x32xf32, #tpu.memory_space<vmem>>, vector<1x128x32xf32>
    %3 = vector.shape_cast %2 : vector<1x128x32xf32> to vector<128x32xf32>
    %4 = arith.truncf %3 : vector<128x32xf32> to vector<128x32xbf16>
    %cst = arith.constant dense<0.000000e+00> : vector<128x32xf32>
    %5 = tpu.matmul %1, %4, %cst {dimension_numbers = #tpu.dot_dimension_numbers<[1], [0], [0], [1], [0, 0, 1, 1], [], []>} : vector<128x128xbf16>, vector<128x32xbf16>, vector<128x32xf32> -> vector<128x32xf32>
    %6 = tpu.concatenate %3, %5 in 1 : vector<128x32xf32>, vector<128x32xf32> -> vector<128x64xf32>
    %7 = arith.truncf %6 : vector<128x64xf32> to vector<128x64xbf16>
    %c0_5 = arith.constant 0 : index
    %c0_6 = arith.constant 0 : index
    %8 = vector.load %arg3[%c0_5, %c0_6] : memref<64x64xbf16, #tpu.memory_space<vmem>>, vector<64x64xbf16>
    %cst_7 = arith.constant dense<0.000000e+00> : vector<128x64xf32>
    %9 = tpu.matmul %7, %8, %cst_7 {dimension_numbers = #tpu.dot_dimension_numbers<[1], [0], [0], [1], [0, 0, 1, 1], [], []>} : vector<128x64xbf16>, vector<64x64xbf16>, vector<128x64xf32> -> vector<128x64xf32>
    %c0_8 = arith.constant 0 : index
    %c0_9 = arith.constant 0 : index
    %10 = vector.load %arg4[%c0_8, %c0_9] : memref<1x64xf32, #tpu.memory_space<vmem>>, vector<1x64xf32>
    %11 = vector.broadcast %10 : vector<1x64xf32> to vector<128x64xf32>
    %12 = arith.addf %9, %11 : vector<128x64xf32>
    %cst_10 = arith.constant 0.000000e+00 : f32
    %13 = vector.broadcast %cst_10 : f32 to vector<128x64xf32>
    %14 = arith.maximumf %12, %13 : vector<128x64xf32>
    %15 = arith.truncf %14 : vector<128x64xf32> to vector<128x64xbf16>
    %cst_11 = arith.constant dense<0.000000e+00> : vector<128x64xf32>
    %16 = tpu.matmul %1, %15, %cst_11 {dimension_numbers = #tpu.dot_dimension_numbers<[1], [0], [0], [1], [0, 0, 1, 1], [], []>} : vector<128x128xbf16>, vector<128x64xbf16>, vector<128x64xf32> -> vector<128x64xf32>
    %17 = tpu.concatenate %14, %16 in 1 : vector<128x64xf32>, vector<128x64xf32> -> vector<128x128xf32>
    %18 = arith.truncf %17 : vector<128x128xf32> to vector<128x128xbf16>
    %c0_12 = arith.constant 0 : index
    %c0_13 = arith.constant 0 : index
    %19 = vector.load %arg5[%c0_12, %c0_13] : memref<128x64xbf16, #tpu.memory_space<vmem>>, vector<128x64xbf16>
    %cst_14 = arith.constant dense<0.000000e+00> : vector<128x64xf32>
    %20 = tpu.matmul %18, %19, %cst_14 {dimension_numbers = #tpu.dot_dimension_numbers<[1], [0], [0], [1], [0, 0, 1, 1], [], []>} : vector<128x128xbf16>, vector<128x64xbf16>, vector<128x64xf32> -> vector<128x64xf32>
    %c0_15 = arith.constant 0 : index
    %c0_16 = arith.constant 0 : index
    %21 = vector.load %arg6[%c0_15, %c0_16] : memref<1x64xf32, #tpu.memory_space<vmem>>, vector<1x64xf32>
    %22 = vector.broadcast %21 : vector<1x64xf32> to vector<128x64xf32>
    %23 = arith.addf %20, %22 : vector<128x64xf32>
    %cst_17 = arith.constant 0.000000e+00 : f32
    %24 = vector.broadcast %cst_17 : f32 to vector<128x64xf32>
    %25 = arith.maximumf %23, %24 : vector<128x64xf32>
    %26 = arith.truncf %25 : vector<128x64xf32> to vector<128x64xbf16>
    %cst_18 = arith.constant dense<0.000000e+00> : vector<128x64xf32>
    %27 = tpu.matmul %1, %26, %cst_18 {dimension_numbers = #tpu.dot_dimension_numbers<[1], [0], [0], [1], [0, 0, 1, 1], [], []>} : vector<128x128xbf16>, vector<128x64xbf16>, vector<128x64xf32> -> vector<128x64xf32>
    %28 = tpu.concatenate %25, %27 in 1 : vector<128x64xf32>, vector<128x64xf32> -> vector<128x128xf32>
    %29 = arith.truncf %28 : vector<128x128xf32> to vector<128x128xbf16>
    %c0_19 = arith.constant 0 : index
    %c0_20 = arith.constant 0 : index
    %30 = vector.load %arg7[%c0_19, %c0_20] : memref<128x32xbf16, #tpu.memory_space<vmem>>, vector<128x32xbf16>
    %cst_21 = arith.constant dense<0.000000e+00> : vector<128x32xf32>
    %31 = tpu.matmul %29, %30, %cst_21 {dimension_numbers = #tpu.dot_dimension_numbers<[1], [0], [0], [1], [0, 0, 1, 1], [], []>} : vector<128x128xbf16>, vector<128x32xbf16>, vector<128x32xf32> -> vector<128x32xf32>
    %c0_22 = arith.constant 0 : index
    %c0_23 = arith.constant 0 : index
    %32 = vector.load %arg8[%c0_22, %c0_23] : memref<1x32xf32, #tpu.memory_space<vmem>>, vector<1x32xf32>
    %33 = vector.broadcast %32 : vector<1x32xf32> to vector<128x32xf32>
    %34 = arith.addf %31, %33 : vector<128x32xf32>
    %cst_24 = arith.constant 0.000000e+00 : f32
    %35 = vector.broadcast %cst_24 : f32 to vector<128x32xf32>
    %36 = arith.maximumf %34, %35 : vector<128x32xf32>
    %37 = arith.truncf %36 : vector<128x32xf32> to vector<128x32xbf16>
    %cst_25 = arith.constant dense<0.000000e+00> : vector<128x32xf32>
    %38 = tpu.matmul %1, %37, %cst_25 {dimension_numbers = #tpu.dot_dimension_numbers<[1], [0], [0], [1], [0, 0, 1, 1], [], []>} : vector<128x128xbf16>, vector<128x32xbf16>, vector<128x32xf32> -> vector<128x32xf32>
    %39 = tpu.concatenate %36, %38 in 1 : vector<128x32xf32>, vector<128x32xf32> -> vector<128x64xf32>
    %40 = arith.truncf %39 : vector<128x64xf32> to vector<128x64xbf16>
    %c0_26 = arith.constant 0 : index
    %c0_27 = arith.constant 0 : index
    %41 = vector.load %arg9[%c0_26, %c0_27] : memref<64x32xbf16, #tpu.memory_space<vmem>>, vector<64x32xbf16>
    %cst_28 = arith.constant dense<0.000000e+00> : vector<128x32xf32>
    %42 = tpu.matmul %40, %41, %cst_28 {dimension_numbers = #tpu.dot_dimension_numbers<[1], [0], [0], [1], [0, 0, 1, 1], [], []>} : vector<128x64xbf16>, vector<64x32xbf16>, vector<128x32xf32> -> vector<128x32xf32>
    %c0_29 = arith.constant 0 : index
    %c0_30 = arith.constant 0 : index
    %43 = vector.load %arg10[%c0_29, %c0_30] : memref<1x32xf32, #tpu.memory_space<vmem>>, vector<1x32xf32>
    %44 = vector.broadcast %43 : vector<1x32xf32> to vector<128x32xf32>
    %45 = arith.addf %42, %44 : vector<128x32xf32>
    %cst_31 = arith.constant 0.000000e+00 : f32
    %46 = vector.broadcast %cst_31 : f32 to vector<128x32xf32>
    %47 = arith.maximumf %45, %46 : vector<128x32xf32>
    %48 = arith.truncf %47 : vector<128x32xf32> to vector<128x32xbf16>
    %c0_32 = arith.constant 0 : index
    %c0_33 = arith.constant 0 : index
    %49 = vector.load %arg11[%c0_32, %c0_33] : memref<32x32xbf16, #tpu.memory_space<vmem>>, vector<32x32xbf16>
    %cst_34 = arith.constant dense<0.000000e+00> : vector<128x32xf32>
    %50 = tpu.matmul %48, %49, %cst_34 {dimension_numbers = #tpu.dot_dimension_numbers<[1], [0], [0], [1], [0, 0, 1, 1], [], []>} : vector<128x32xbf16>, vector<32x32xbf16>, vector<128x32xf32> -> vector<128x32xf32>
    %c0_35 = arith.constant 0 : index
    %c0_36 = arith.constant 0 : index
    %51 = vector.load %arg12[%c0_35, %c0_36] : memref<1x32xf32, #tpu.memory_space<vmem>>, vector<1x32xf32>
    %52 = vector.broadcast %51 : vector<1x32xf32> to vector<128x32xf32>
    %53 = arith.addf %50, %52 : vector<128x32xf32>
    %cst_37 = arith.constant 0.000000e+00 : f32
    %54 = vector.broadcast %cst_37 : f32 to vector<128x32xf32>
    %55 = arith.cmpf ogt, %53, %54 : vector<128x32xf32>
    %c0_38 = arith.constant 0 : index
    %c0_39 = arith.constant 0 : index
    %56 = vector.load %arg13[%c0_38, %c0_39] : memref<1x32xf32, #tpu.memory_space<vmem>>, vector<1x32xf32>
    %57 = vector.broadcast %56 : vector<1x32xf32> to vector<128x32xf32>
    %58 = arith.mulf %57, %53 : vector<128x32xf32>
    %59 = arith.select %55, %53, %58 : vector<128x32xi1>, vector<128x32xf32>
    %60 = arith.truncf %59 : vector<128x32xf32> to vector<128x32xbf16>
    %c0_40 = arith.constant 0 : index
    %c0_41 = arith.constant 0 : index
    %61 = vector.load %arg14[%c0_40, %c0_41] : memref<32x2xbf16, #tpu.memory_space<vmem>>, vector<32x2xbf16>
    %cst_42 = arith.constant dense<0.000000e+00> : vector<128x2xf32>
    %62 = tpu.matmul %60, %61, %cst_42 {dimension_numbers = #tpu.dot_dimension_numbers<[1], [0], [0], [1], [0, 0, 1, 1], [], []>} : vector<128x32xbf16>, vector<32x2xbf16>, vector<128x2xf32> -> vector<128x2xf32>
    %c0_43 = arith.constant 0 : index
    %c0_44 = arith.constant 0 : index
    %63 = vector.load %arg15[%c0_43, %c0_44] : memref<1x2xf32, #tpu.memory_space<vmem>>, vector<1x2xf32>
    %64 = vector.broadcast %63 : vector<1x2xf32> to vector<128x2xf32>
    %65 = arith.addf %62, %64 : vector<128x2xf32>
    %c0_45 = arith.constant 0 : index
    %c0_46 = arith.constant 0 : index
    %c0_47 = arith.constant 0 : index
    %66 = vector.load %arg16[%c0_45, %c0_46, %c0_47] : memref<1x128x2xf32, #tpu.memory_space<vmem>>, vector<1x128x2xf32>
    %67 = vector.shape_cast %66 : vector<1x128x2xf32> to vector<128x2xf32>
    %68 = vector.shape_cast %65 : vector<128x2xf32> to vector<1x128x2xf32>
    tpu.vector_store %arg16[%c0_45, %c0_46, %c0_47], %68 {strides = array<i32>} : memref<1x128x2xf32, #tpu.memory_space<vmem>>, vector<1x128x2xf32>,
    return
  }
  func.func @transform_0(%arg0: i32) -> (i32, i32, i32) {
    %c0_i32 = arith.constant 0 : i32
    %c0_i32_0 = arith.constant 0 : i32
    %c0_i32_1 = arith.constant 0 : i32
    return %arg0, %c0_i32, %c0_i32_0 : i32, i32, i32
  }
  func.func @transform_1(%arg0: i32) -> (i32, i32, i32) {
    %c0_i32 = arith.constant 0 : i32
    %c0_i32_0 = arith.constant 0 : i32
    %c0_i32_1 = arith.constant 0 : i32
    return %arg0, %c0_i32, %c0_i32_0 : i32, i32, i32
  }
  func.func @transform_2(%arg0: i32) -> (i32, i32) {
    %c0_i32 = arith.constant 0 : i32
    %c0_i32_0 = arith.constant 0 : i32
    %c0_i32_1 = arith.constant 0 : i32
    return %c0_i32, %c0_i32_0 : i32, i32
  }
  func.func @transform_3(%arg0: i32) -> (i32, i32) {
    %c0_i32 = arith.constant 0 : i32
    %c0_i32_0 = arith.constant 0 : i32
    %c0_i32_1 = arith.constant 0 : i32
    return %c0_i32, %c0_i32_0 : i32, i32
  }
  func.func @transform_4(%arg0: i32) -> (i32, i32) {
    %c0_i32 = arith.constant 0 : i32
    %c0_i32_0 = arith.constant 0 : i32
    %c0_i32_1 = arith.constant 0 : i32
    return %c0_i32, %c0_i32_0 : i32, i32
  }
  func.func @transform_5(%arg0: i32) -> (i32, i32) {
    %c0_i32 = arith.constant 0 : i32
    %c0_i32_0 = arith.constant 0 : i32
    %c0_i32_1 = arith.constant 0 : i32
    return %c0_i32, %c0_i32_0 : i32, i32
  }
  func.func @transform_6(%arg0: i32) -> (i32, i32) {
    %c0_i32 = arith.constant 0 : i32
    %c0_i32_0 = arith.constant 0 : i32
    %c0_i32_1 = arith.constant 0 : i32
    return %c0_i32, %c0_i32_0 : i32, i32
  }
  func.func @transform_7(%arg0: i32) -> (i32, i32) {
    %c0_i32 = arith.constant 0 : i32
    %c0_i32_0 = arith.constant 0 : i32
    %c0_i32_1 = arith.constant 0 : i32
    return %c0_i32, %c0_i32_0 : i32, i32
  }
  func.func @transform_8(%arg0: i32) -> (i32, i32) {
    %c0_i32 = arith.constant 0 : i32
    %c0_i32_0 = arith.constant 0 : i32
    %c0_i32_1 = arith.constant 0 : i32
    return %c0_i32, %c0_i32_0 : i32, i32
  }
  func.func @transform_9(%arg0: i32) -> (i32, i32) {
    %c0_i32 = arith.constant 0 : i32
    %c0_i32_0 = arith.constant 0 : i32
    %c0_i32_1 = arith.constant 0 : i32
    return %c0_i32, %c0_i32_0 : i32, i32
  }
  func.func @transform_10(%arg0: i32) -> (i32, i32) {
    %c0_i32 = arith.constant 0 : i32
    %c0_i32_0 = arith.constant 0 : i32
    %c0_i32_1 = arith.constant 0 : i32
    return %c0_i32, %c0_i32_0 : i32, i32
  }
  func.func @transform_11(%arg0: i32) -> (i32, i32) {
    %c0_i32 = arith.constant 0 : i32
    %c0_i32_0 = arith.constant 0 : i32
    %c0_i32_1 = arith.constant 0 : i32
    return %c0_i32, %c0_i32_0 : i32, i32
  }
  func.func @transform_12(%arg0: i32) -> (i32, i32) {
    %c0_i32 = arith.constant 0 : i32
    %c0_i32_0 = arith.constant 0 : i32
    %c0_i32_1 = arith.constant 0 : i32
    return %c0_i32, %c0_i32_0 : i32, i32
  }
  func.func @transform_13(%arg0: i32) -> (i32, i32) {
    %c0_i32 = arith.constant 0 : i32
    %c0_i32_0 = arith.constant 0 : i32
    %c0_i32_1 = arith.constant 0 : i32
    return %c0_i32, %c0_i32_0 : i32, i32
  }
  func.func @transform_14(%arg0: i32) -> (i32, i32) {
    %c0_i32 = arith.constant 0 : i32
    %c0_i32_0 = arith.constant 0 : i32
    %c0_i32_1 = arith.constant 0 : i32
    return %c0_i32, %c0_i32_0 : i32, i32
  }
  func.func @transform_15(%arg0: i32) -> (i32, i32, i32) {
    %c0_i32 = arith.constant 0 : i32
    %c0_i32_0 = arith.constant 0 : i32
    %c0_i32_1 = arith.constant 0 : i32
    return %arg0, %c0_i32, %c0_i32_0 : i32, i32, i32
  }
}

</mosaic_0001>

<llo_original>
// kernel: gcn_e_forward.1
$region0: #{gcn_e_forward.1}
  #allocation0 [shape = 'u32[]', space=smem, size = 0x4, offset = 0x4, fixed_abs, tag = 'smem constant byte address 0x4 - core index']
  #allocation1 [shape = 'u32[144,128]{1,0:T(1,128)}', space=vmem, size = 0x12000, scoped, tag = 'internal scratch']
  %s0 = inlined_call_operand.vmem [shape: f32[2,128,32], index: 0, kind: input, shape index: {}]
  %s1 = inlined_call_operand.vmem [shape: bf16[2,128,128], index: 1, kind: input, shape index: {}]
  %s2 = inlined_call_operand.vmem [shape: bf16[64,64], index: 2, kind: input, shape index: {}]
  %s3 = inlined_call_operand.vmem [shape: f32[1,64], index: 3, kind: input, shape index: {}]
  %s4 = inlined_call_operand.vmem [shape: bf16[128,64], index: 4, kind: input, shape index: {}]
  %s5 = inlined_call_operand.vmem [shape: f32[1,64], index: 5, kind: input, shape index: {}]
  %s6 = inlined_call_operand.vmem [shape: bf16[128,32], index: 6, kind: input, shape index: {}]
  %s7 = inlined_call_operand.vmem [shape: f32[1,32], index: 7, kind: input, shape index: {}]
  %s8 = inlined_call_operand.vmem [shape: bf16[64,32], index: 8, kind: input, shape index: {}]
  %s9 = inlined_call_operand.vmem [shape: f32[1,32], index: 9, kind: input, shape index: {}]
  %s10 = inlined_call_operand.vmem [shape: bf16[32,32], index: 10, kind: input, shape index: {}]
  %s11 = inlined_call_operand.vmem [shape: f32[1,32], index: 11, kind: input, shape index: {}]
  %s12 = inlined_call_operand.vmem [shape: f32[1,32], index: 12, kind: input, shape index: {}]
  %s13 = inlined_call_operand.vmem [shape: bf16[32,2], index: 13, kind: input, shape index: {}]
  %s14 = inlined_call_operand.vmem [shape: f32[1,2], index: 14, kind: input, shape index: {}]
  %s15 = inlined_call_operand.vmem [shape: f32[2,128,2], index: 15, kind: output, shape index: {}]
  %s16 = sld [smem:[#allocation0]]
  $region93: #{gcn_e_forward.1} parent=0
    _
  %s18 = ssub.s32 1, %s16
  %s19 = scalar_select 0, %s18, %s16
  loop: start=0, step=1, limit=4
  $region2: #{gcn_e_forward.1} parent=0 // loop_pre_header
    _
  $region3: #{gcn_e_forward.1} parent=0 // loop_header
    %s21 = sphi 0, %s25
    %p22 = scmp.ge.s32.totalorder %s21, 4
    %s31 = sphi 0, %s33
    %s34 = sphi 0, %s31
    %s35 = sphi 0, %s34
    %s51 = sphi 0, %s35
    %s57 = sphi 0, %s59
    %s60 = sphi 0, %s57
    %s61 = sphi 0, %s60
    %s77 = sphi 0, %s61
    %s81 = sphi 0, %s81
    %s83 = sphi 0, %s81
    %s84 = sphi 0, %s83
    %s98 = sphi 0, %s84
    %s102 = sphi 0, %s102
    %s104 = sphi 0, %s102
    %s105 = sphi 0, %s104
    %s119 = sphi 0, %s105
    %s123 = sphi 0, %s123
    %s125 = sphi 0, %s123
    %s126 = sphi 0, %s125
    %s140 = sphi 0, %s126
    %s144 = sphi 0, %s144
    %s146 = sphi 0, %s144
    %s147 = sphi 0, %s146
    %s161 = sphi 0, %s147
    %s165 = sphi 0, %s165
    %s167 = sphi 0, %s165
    %s168 = sphi 0, %s167
    %s182 = sphi 0, %s168
    %s186 = sphi 0, %s186
    %s188 = sphi 0, %s186
    %s189 = sphi 0, %s188
    %s203 = sphi 0, %s189
    %s207 = sphi 0, %s207
    %s209 = sphi 0, %s207
    %s210 = sphi 0, %s209
    %s224 = sphi 0, %s210
    %s228 = sphi 0, %s228
    %s230 = sphi 0, %s228
    %s231 = sphi 0, %s230
    %s245 = sphi 0, %s231
    %s249 = sphi 0, %s249
    %s251 = sphi 0, %s249
    %s252 = sphi 0, %s251
    %s266 = sphi 0, %s252
    %s270 = sphi 0, %s270
    %s272 = sphi 0, %s270
    %s273 = sphi 0, %s272
    %s287 = sphi 0, %s273
    %s291 = sphi 0, %s291
    %s293 = sphi 0, %s291
    %s294 = sphi 0, %s293
    %s308 = sphi 0, %s294
    %s312 = sphi 0, %s312
    %s314 = sphi 0, %s312
    %s315 = sphi 0, %s314
    %s329 = sphi 0, %s315
    %s333 = sphi 0, %s333
    %s335 = sphi 0, %s333
    %s336 = sphi 0, %s335
    %s350 = sphi 0, %s336
    %s356 = sphi 0, %s358
    %s359 = sphi 0, %s356
    %s360 = sphi 0, %s359
    %s376 = sphi 0, %s360
  $region4: #{gcn_e_forward.1} parent=0 // loop_header_branch
    %24 = sbr.rel (%p22) target = $region8
  $region5: #{gcn_e_forward.1} parent=0 // loop_body
    %s26 = ssub.s32 %s21, 1
    %s27 = ssub.s32 %s21, 2
    %s28 = sadd.s32 %s21, 1
    %s29 = ssub.s32 %s21, %s28
    %p30 = scmp.eq.s32.totalorder %s29, 0
    %s32 = sadd.s32 %s31, 1
    %s33 = scalar_select %p30, %s31, %s32
    %p36 = pneg %p30
    %p37 = scmp.eq.s32.totalorder %s21, 1
    %p38 = por %p36, %p37
    %p39 = scmp.ne.s32.totalorder %s31, %s34
    %p40 = scmp.eq.s32.totalorder %s21, 0
    %p41 = por %p39, %p40
    %p42 = scmp.ne.s32.totalorder %s31, %s34
    %p43 = scmp.eq.s32.totalorder %s26, 1
    %p44 = por %p42, %p43
    %p45 = scmp.ne.s32.totalorder %s34, %s35
    %p46 = scmp.eq.s32.totalorder %s26, 0
    %p47 = por %p45, %p46
    %p48 = scmp.ne.s32.totalorder %s34, %s35
    %p49 = scmp.eq.s32.totalorder %s27, 1
    %p50 = por %p48, %p49
    %p52 = scmp.ne.s32.totalorder %s35, %s51
    %p53 = scmp.eq.s32.totalorder %s27, 0
    %p54 = por %p52, %p53
    %s55 = ssub.s32 %s21, %s28
    %p56 = scmp.eq.s32.totalorder %s55, 0
    %s58 = sadd.s32 %s57, 1
    %s59 = scalar_select %p56, %s57, %s58
    %p62 = pneg %p56
    %p63 = scmp.eq.s32.totalorder %s21, 1
    %p64 = por %p62, %p63
    %p65 = scmp.ne.s32.totalorder %s57, %s60
    %p66 = scmp.eq.s32.totalorder %s21, 0
    %p67 = por %p65, %p66
    %p68 = scmp.ne.s32.totalorder %s57, %s60
    %p69 = scmp.eq.s32.totalorder %s26, 1
    %p70 = por %p68, %p69
    %p71 = scmp.ne.s32.totalorder %s60, %s61
    %p72 = scmp.eq.s32.totalorder %s26, 0
    %p73 = por %p71, %p72
    %p74 = scmp.ne.s32.totalorder %s60, %s61
    %p75 = scmp.eq.s32.totalorder %s27, 1
    %p76 = por %p74, %p75
    %p78 = scmp.ne.s32.totalorder %s61, %s77
    %p79 = scmp.eq.s32.totalorder %s27, 0
    %p80 = por %p78, %p79
    %s82 = sadd.s32 %s81, 1
    %p85 = scmp.eq.s32.totalorder %s21, 1
    %p86 = scmp.ne.s32.totalorder %s81, %s83
    %p87 = scmp.eq.s32.totalorder %s21, 0
    %p88 = por %p86, %p87
    %p89 = scmp.ne.s32.totalorder %s81, %s83
    %p90 = scmp.eq.s32.totalorder %s26, 1
    %p91 = por %p89, %p90
    %p92 = scmp.ne.s32.totalorder %s83, %s84
    %p93 = scmp.eq.s32.totalorder %s26, 0
    %p94 = por %p92, %p93
    %p95 = scmp.ne.s32.totalorder %s83, %s84
    %p96 = scmp.eq.s32.totalorder %s27, 1
    %p97 = por %p95, %p96
    %p99 = scmp.ne.s32.totalorder %s84, %s98
    %p100 = scmp.eq.s32.totalorder %s27, 0
    %p101 = por %p99, %p100
    %s103 = sadd.s32 %s102, 1
    %p106 = scmp.eq.s32.totalorder %s21, 1
    %p107 = scmp.ne.s32.totalorder %s102, %s104
    %p108 = scmp.eq.s32.totalorder %s21, 0
    %p109 = por %p107, %p108
    %p110 = scmp.ne.s32.totalorder %s102, %s104
    %p111 = scmp.eq.s32.totalorder %s26, 1
    %p112 = por %p110, %p111
    %p113 = scmp.ne.s32.totalorder %s104, %s105
    %p114 = scmp.eq.s32.totalorder %s26, 0
    %p115 = por %p113, %p114
    %p116 = scmp.ne.s32.totalorder %s104, %s105
    %p117 = scmp.eq.s32.totalorder %s27, 1
    %p118 = por %p116, %p117
    %p120 = scmp.ne.s32.totalorder %s105, %s119
    %p121 = scmp.eq.s32.totalorder %s27, 0
    %p122 = por %p120, %p121
    %s124 = sadd.s32 %s123, 1
    %p127 = scmp.eq.s32.totalorder %s21, 1
    %p128 = scmp.ne.s32.totalorder %s123, %s125
    %p129 = scmp.eq.s32.totalorder %s21, 0
    %p130 = por %p128, %p129
    %p131 = scmp.ne.s32.totalorder %s123, %s125
    %p132 = scmp.eq.s32.totalorder %s26, 1
    %p133 = por %p131, %p132
    %p134 = scmp.ne.s32.totalorder %s125, %s126
    %p135 = scmp.eq.s32.totalorder %s26, 0
    %p136 = por %p134, %p135
    %p137 = scmp.ne.s32.totalorder %s125, %s126
    %p138 = scmp.eq.s32.totalorder %s27, 1
    %p139 = por %p137, %p138
    %p141 = scmp.ne.s32.totalorder %s126, %s140
    %p142 = scmp.eq.s32.totalorder %s27, 0
    %p143 = por %p141, %p142
    %s145 = sadd.s32 %s144, 1
    %p148 = scmp.eq.s32.totalorder %s21, 1
    %p149 = scmp.ne.s32.totalorder %s144, %s146
    %p150 = scmp.eq.s32.totalorder %s21, 0
    %p151 = por %p149, %p150
    %p152 = scmp.ne.s32.totalorder %s144, %s146
    %p153 = scmp.eq.s32.totalorder %s26, 1
    %p154 = por %p152, %p153
    %p155 = scmp.ne.s32.totalorder %s146, %s147
    %p156 = scmp.eq.s32.totalorder %s26, 0
    %p157 = por %p155, %p156
    %p158 = scmp.ne.s32.totalorder %s146, %s147
    %p159 = scmp.eq.s32.totalorder %s27, 1
    %p160 = por %p158, %p159
    %p162 = scmp.ne.s32.totalorder %s147, %s161
    %p163 = scmp.eq.s32.totalorder %s27, 0
    %p164 = por %p162, %p163
    %s166 = sadd.s32 %s165, 1
    %p169 = scmp.eq.s32.totalorder %s21, 1
    %p170 = scmp.ne.s32.totalorder %s165, %s167
    %p171 = scmp.eq.s32.totalorder %s21, 0
    %p172 = por %p170, %p171
    %p173 = scmp.ne.s32.totalorder %s165, %s167
    %p174 = scmp.eq.s32.totalorder %s26, 1
    %p175 = por %p173, %p174
    %p176 = scmp.ne.s32.totalorder %s167, %s168
    %p177 = scmp.eq.s32.totalorder %s26, 0
    %p178 = por %p176, %p177
    %p179 = scmp.ne.s32.totalorder %s167, %s168
    %p180 = scmp.eq.s32.totalorder %s27, 1
    %p181 = por %p179, %p180
    %p183 = scmp.ne.s32.totalorder %s168, %s182
    %p184 = scmp.eq.s32.totalorder %s27, 0
    %p185 = por %p183, %p184
    %s187 = sadd.s32 %s186, 1
    %p190 = scmp.eq.s32.totalorder %s21, 1
    %p191 = scmp.ne.s32.totalorder %s186, %s188
    %p192 = scmp.eq.s32.totalorder %s21, 0
    %p193 = por %p191, %p192
    %p194 = scmp.ne.s32.totalorder %s186, %s188
    %p195 = scmp.eq.s32.totalorder %s26, 1
    %p196 = por %p194, %p195
    %p197 = scmp.ne.s32.totalorder %s188, %s189
    %p198 = scmp.eq.s32.totalorder %s26, 0
    %p199 = por %p197, %p198
    %p200 = scmp.ne.s32.totalorder %s188, %s189
    %p201 = scmp.eq.s32.totalorder %s27, 1
    %p202 = por %p200, %p201
    %p204 = scmp.ne.s32.totalorder %s189, %s203
    %p205 = scmp.eq.s32.totalorder %s27, 0
    %p206 = por %p204, %p205
    %s208 = sadd.s32 %s207, 1
    %p211 = scmp.eq.s32.totalorder %s21, 1
    %p212 = scmp.ne.s32.totalorder %s207, %s209
    %p213 = scmp.eq.s32.totalorder %s21, 0
    %p214 = por %p212, %p213
    %p215 = scmp.ne.s32.totalorder %s207, %s209
    %p216 = scmp.eq.s32.totalorder %s26, 1
    %p217 = por %p215, %p216
    %p218 = scmp.ne.s32.totalorder %s209, %s210
    %p219 = scmp.eq.s32.totalorder %s26, 0
    %p220 = por %p218, %p219
    %p221 = scmp.ne.s32.totalorder %s209, %s210
    %p222 = scmp.eq.s32.totalorder %s27, 1
    %p223 = por %p221, %p222
    %p225 = scmp.ne.s32.totalorder %s210, %s224
    %p226 = scmp.eq.s32.totalorder %s27, 0
    %p227 = por %p225, %p226
    %s229 = sadd.s32 %s228, 1
    %p232 = scmp.eq.s32.totalorder %s21, 1
    %p233 = scmp.ne.s32.totalorder %s228, %s230
    %p234 = scmp.eq.s32.totalorder %s21, 0
    %p235 = por %p233, %p234
    %p236 = scmp.ne.s32.totalorder %s228, %s230
    %p237 = scmp.eq.s32.totalorder %s26, 1
    %p238 = por %p236, %p237
    %p239 = scmp.ne.s32.totalorder %s230, %s231
    %p240 = scmp.eq.s32.totalorder %s26, 0
    %p241 = por %p239, %p240
    %p242 = scmp.ne.s32.totalorder %s230, %s231
    %p243 = scmp.eq.s32.totalorder %s27, 1
    %p244 = por %p242, %p243
    %p246 = scmp.ne.s32.totalorder %s231, %s245
    %p247 = scmp.eq.s32.totalorder %s27, 0
    %p248 = por %p246, %p247
    %s250 = sadd.s32 %s249, 1
    %p253 = scmp.eq.s32.totalorder %s21, 1
    %p254 = scmp.ne.s32.totalorder %s249, %s251
    %p255 = scmp.eq.s32.totalorder %s21, 0
    %p256 = por %p254, %p255
    %p257 = scmp.ne.s32.totalorder %s249, %s251
    %p258 = scmp.eq.s32.totalorder %s26, 1
    %p259 = por %p257, %p258
    %p260 = scmp.ne.s32.totalorder %s251, %s252
    %p261 = scmp.eq.s32.totalorder %s26, 0
    %p262 = por %p260, %p261
    %p263 = scmp.ne.s32.totalorder %s251, %s252
    %p264 = scmp.eq.s32.totalorder %s27, 1
    %p265 = por %p263, %p264
    %p267 = scmp.ne.s32.totalorder %s252, %s266
    %p268 = scmp.eq.s32.totalorder %s27, 0
    %p269 = por %p267, %p268
    %s271 = sadd.s32 %s270, 1
    %p274 = scmp.eq.s32.totalorder %s21, 1
    %p275 = scmp.ne.s32.totalorder %s270, %s272
    %p276 = scmp.eq.s32.totalorder %s21, 0
    %p277 = por %p275, %p276
    %p278 = scmp.ne.s32.totalorder %s270, %s272
    %p279 = scmp.eq.s32.totalorder %s26, 1
    %p280 = por %p278, %p279
    %p281 = scmp.ne.s32.totalorder %s272, %s273
    %p282 = scmp.eq.s32.totalorder %s26, 0
    %p283 = por %p281, %p282
    %p284 = scmp.ne.s32.totalorder %s272, %s273
    %p285 = scmp.eq.s32.totalorder %s27, 1
    %p286 = por %p284, %p285
    %p288 = scmp.ne.s32.totalorder %s273, %s287
    %p289 = scmp.eq.s32.totalorder %s27, 0
    %p290 = por %p288, %p289
    %s292 = sadd.s32 %s291, 1
    %p295 = scmp.eq.s32.totalorder %s21, 1
    %p296 = scmp.ne.s32.totalorder %s291, %s293
    %p297 = scmp.eq.s32.totalorder %s21, 0
    %p298 = por %p296, %p297
    %p299 = scmp.ne.s32.totalorder %s291, %s293
    %p300 = scmp.eq.s32.totalorder %s26, 1
    %p301 = por %p299, %p300
    %p302 = scmp.ne.s32.totalorder %s293, %s294
    %p303 = scmp.eq.s32.totalorder %s26, 0
    %p304 = por %p302, %p303
    %p305 = scmp.ne.s32.totalorder %s293, %s294
    %p306 = scmp.eq.s32.totalorder %s27, 1
    %p307 = por %p305, %p306
    %p309 = scmp.ne.s32.totalorder %s294, %s308
    %p310 = scmp.eq.s32.totalorder %s27, 0
    %p311 = por %p309, %p310
    %s313 = sadd.s32 %s312, 1
    %p316 = scmp.eq.s32.totalorder %s21, 1
    %p317 = scmp.ne.s32.totalorder %s312, %s314
    %p318 = scmp.eq.s32.totalorder %s21, 0
    %p319 = por %p317, %p318
    %p320 = scmp.ne.s32.totalorder %s312, %s314
    %p321 = scmp.eq.s32.totalorder %s26, 1
    %p322 = por %p320, %p321
    %p323 = scmp.ne.s32.totalorder %s314, %s315
    %p324 = scmp.eq.s32.totalorder %s26, 0
    %p325 = por %p323, %p324
    %p326 = scmp.ne.s32.totalorder %s314, %s315
    %p327 = scmp.eq.s32.totalorder %s27, 1
    %p328 = por %p326, %p327
    %p330 = scmp.ne.s32.totalorder %s315, %s329
    %p331 = scmp.eq.s32.totalorder %s27, 0
    %p332 = por %p330, %p331
    %s334 = sadd.s32 %s333, 1
    %p337 = scmp.eq.s32.totalorder %s21, 1
    %p338 = scmp.ne.s32.totalorder %s333, %s335
    %p339 = scmp.eq.s32.totalorder %s21, 0
    %p340 = por %p338, %p339
    %p341 = scmp.ne.s32.totalorder %s333, %s335
    %p342 = scmp.eq.s32.totalorder %s26, 1
    %p343 = por %p341, %p342
    %p344 = scmp.ne.s32.totalorder %s335, %s336
    %p345 = scmp.eq.s32.totalorder %s26, 0
    %p346 = por %p344, %p345
    %p347 = scmp.ne.s32.totalorder %s335, %s336
    %p348 = scmp.eq.s32.totalorder %s27, 1
    %p349 = por %p347, %p348
    %p351 = scmp.ne.s32.totalorder %s336, %s350
    %p352 = scmp.eq.s32.totalorder %s27, 0
    %p353 = por %p351, %p352
    %s354 = ssub.s32 %s21, %s28
    %p355 = scmp.eq.s32.totalorder %s354, 0
    %s357 = sadd.s32 %s356, 1
    %s358 = scalar_select %p355, %s356, %s357
    %p361 = pneg %p355
    %p362 = scmp.eq.s32.totalorder %s21, 1
    %p363 = por %p361, %p362
    %p364 = scmp.ne.s32.totalorder %s356, %s359
    %p365 = scmp.eq.s32.totalorder %s21, 0
    %p366 = por %p364, %p365
    %p367 = scmp.ne.s32.totalorder %s356, %s359
    %p368 = scmp.eq.s32.totalorder %s26, 1
    %p369 = por %p367, %p368
    %p370 = scmp.ne.s32.totalorder %s359, %s360
    %p371 = scmp.eq.s32.totalorder %s26, 0
    %p372 = por %p370, %p371
    %p373 = scmp.ne.s32.totalorder %s359, %s360
    %p374 = scmp.eq.s32.totalorder %s27, 1
    %p375 = por %p373, %p374
    %p377 = scmp.ne.s32.totalorder %s360, %s376
    %p378 = scmp.eq.s32.totalorder %s27, 0
    %p379 = por %p377, %p378
    %p380 = scmp.le.s32.totalorder 1, %s21
    %p381 = scmp.lt.s32.totalorder %s21, 3
    %p382 = pnand %p380, %p381
    %p383 = pneg %p382
    // Predicated region
    $region9: #{gcn_e_forward.1} parent=5 // pred_check
      _
    $region10: #{gcn_e_forward.1} parent=5 // pred_check_branch
      %385 = sbr.rel (%p382) target = $region12
    $region11: #{gcn_e_forward.1} parent=5 // pred_region
      %s386 = ssub.s32 %s21, 1
      // Predicated region
      $region13: #{gcn_e_forward.1} parent=11 // pred_check
        %p387 = pneg %p94
      $region14: #{gcn_e_forward.1} parent=11 // pred_check_branch
        %389 = sbr.rel (%p387) target = $region16
      $region15: #{gcn_e_forward.1} parent=11 // pred_region
        _
      $region16: #{gcn_e_forward.1} parent=11 // pred_fallthru
        _
      // Predicated region
      $region17: #{gcn_e_forward.1} parent=11 // pred_check
        %p390 = pneg %p115
      $region18: #{gcn_e_forward.1} parent=11 // pred_check_branch
        %392 = sbr.rel (%p390) target = $region20
      $region19: #{gcn_e_forward.1} parent=11 // pred_region
        _
      $region20: #{gcn_e_forward.1} parent=11 // pred_fallthru
        _
      // Predicated region
      $region21: #{gcn_e_forward.1} parent=11 // pred_check
        %p393 = pneg %p136
      $region22: #{gcn_e_forward.1} parent=11 // pred_check_branch
        %395 = sbr.rel (%p393) target = $region24
      $region23: #{gcn_e_forward.1} parent=11 // pred_region
        _
      $region24: #{gcn_e_forward.1} parent=11 // pred_fallthru
        _
      // Predicated region
      $region25: #{gcn_e_forward.1} parent=11 // pred_check
        %p396 = pneg %p157
      $region26: #{gcn_e_forward.1} parent=11 // pred_check_branch
        %398 = sbr.rel (%p396) target = $region28
      $region27: #{gcn_e_forward.1} parent=11 // pred_region
        _
      $region28: #{gcn_e_forward.1} parent=11 // pred_fallthru
        _
      // Predicated region
      $region29: #{gcn_e_forward.1} parent=11 // pred_check
        %p399 = pneg %p178
      $region30: #{gcn_e_forward.1} parent=11 // pred_check_branch
        %401 = sbr.rel (%p399) target = $region32
      $region31: #{gcn_e_forward.1} parent=11 // pred_region
        _
      $region32: #{gcn_e_forward.1} parent=11 // pred_fallthru
        _
      // Predicated region
      $region33: #{gcn_e_forward.1} parent=11 // pred_check
        %p402 = pneg %p199
      $region34: #{gcn_e_forward.1} parent=11 // pred_check_branch
        %404 = sbr.rel (%p402) target = $region36
      $region35: #{gcn_e_forward.1} parent=11 // pred_region
        _
      $region36: #{gcn_e_forward.1} parent=11 // pred_fallthru
        _
      // Predicated region
      $region37: #{gcn_e_forward.1} parent=11 // pred_check
        %p405 = pneg %p220
      $region38: #{gcn_e_forward.1} parent=11 // pred_check_branch
        %407 = sbr.rel (%p405) target = $region40
      $region39: #{gcn_e_forward.1} parent=11 // pred_region
        _
      $region40: #{gcn_e_forward.1} parent=11 // pred_fallthru
        _
      // Predicated region
      $region41: #{gcn_e_forward.1} parent=11 // pred_check
        %p408 = pneg %p241
      $region42: #{gcn_e_forward.1} parent=11 // pred_check_branch
        %410 = sbr.rel (%p408) target = $region44
      $region43: #{gcn_e_forward.1} parent=11 // pred_region
        _
      $region44: #{gcn_e_forward.1} parent=11 // pred_fallthru
        _
      // Predicated region
      $region45: #{gcn_e_forward.1} parent=11 // pred_check
        %p411 = pneg %p262
      $region46: #{gcn_e_forward.1} parent=11 // pred_check_branch
        %413 = sbr.rel (%p411) target = $region48
      $region47: #{gcn_e_forward.1} parent=11 // pred_region
        _
      $region48: #{gcn_e_forward.1} parent=11 // pred_fallthru
        _
      // Predicated region
      $region49: #{gcn_e_forward.1} parent=11 // pred_check
        %p414 = pneg %p283
      $region50: #{gcn_e_forward.1} parent=11 // pred_check_branch
        %416 = sbr.rel (%p414) target = $region52
      $region51: #{gcn_e_forward.1} parent=11 // pred_region
        _
      $region52: #{gcn_e_forward.1} parent=11 // pred_fallthru
        _
      // Predicated region
      $region53: #{gcn_e_forward.1} parent=11 // pred_check
        %p417 = pneg %p304
      $region54: #{gcn_e_forward.1} parent=11 // pred_check_branch
        %419 = sbr.rel (%p417) target = $region56
      $region55: #{gcn_e_forward.1} parent=11 // pred_region
        _
      $region56: #{gcn_e_forward.1} parent=11 // pred_fallthru
        _
      // Predicated region
      $region57: #{gcn_e_forward.1} parent=11 // pred_check
        %p420 = pneg %p325
      $region58: #{gcn_e_forward.1} parent=11 // pred_check_branch
        %422 = sbr.rel (%p420) target = $region60
      $region59: #{gcn_e_forward.1} parent=11 // pred_region
        _
      $region60: #{gcn_e_forward.1} parent=11 // pred_fallthru
        _
      // Predicated region
      $region61: #{gcn_e_forward.1} parent=11 // pred_check
        %p423 = pneg %p346
      $region62: #{gcn_e_forward.1} parent=11 // pred_check_branch
        %425 = sbr.rel (%p423) target = $region64
      $region63: #{gcn_e_forward.1} parent=11 // pred_region
        _
      $region64: #{gcn_e_forward.1} parent=11 // pred_fallthru
        _
    $region12: #{gcn_e_forward.1} parent=5 // pred_fallthru
      _
    %p426 = scmp.lt.s32.totalorder %s21, 2
    // Predicated region
    $region65: #{gcn_e_forward.1} parent=5 // pred_check
      %p427 = pneg %p426
    $region66: #{gcn_e_forward.1} parent=5 // pred_check_branch
      %429 = sbr.rel (%p427) target = $region68
    $region67: #{gcn_e_forward.1} parent=5 // pred_region
      // Predicated region
      $region69: #{gcn_e_forward.1} parent=67 // pred_check
        %p430 = pneg %p41
      $region70: #{gcn_e_forward.1} parent=67 // pred_check_branch
        %432 = sbr.rel (%p430) target = $region72
      $region71: #{gcn_e_forward.1} parent=67 // pred_region
        %p433 = scmp.lt.s32.totalorder %s21, 1
        %s434 = scalar_select %p433, %s21, 1
        %s435 = smul.addr %s434, 16
        %s436 = smul.addr %s435, 8
        %s437 = scalar_lea.vmem %s0, %s436
      $region72: #{gcn_e_forward.1} parent=67 // pred_fallthru
        _
      // Predicated region
      $region73: #{gcn_e_forward.1} parent=67 // pred_check
        %p438 = pneg %p67
      $region74: #{gcn_e_forward.1} parent=67 // pred_check_branch
        %440 = sbr.rel (%p438) target = $region76
      $region75: #{gcn_e_forward.1} parent=67 // pred_region
        %p441 = scmp.lt.s32.totalorder %s21, 1
        %s442 = scalar_select %p441, %s21, 1
        %s443 = smul.addr %s442, 16
        %s444 = smul.addr %s443, 4
        %s445 = scalar_lea.vmem %s1, %s444
      $region76: #{gcn_e_forward.1} parent=67 // pred_fallthru
        _
    $region68: #{gcn_e_forward.1} parent=5 // pred_fallthru
      _
    %p446 = scmp.le.s32.totalorder 1, %s21
    %p447 = scmp.lt.s32.totalorder %s21, 3
    %p448 = pnand %p446, %p447
    %p449 = pneg %p448
    // Predicated region
    $region77: #{gcn_e_forward.1} parent=5 // pred_check
      _
    $region78: #{gcn_e_forward.1} parent=5 // pred_check_branch
      %451 = sbr.rel (%p448) target = $region80
    $region79: #{gcn_e_forward.1} parent=5 // pred_region
      %s452 = ssub.s32 %s21, 1
      %p453 = scmp.lt.s32.totalorder %s26, 1
      %s454 = scalar_select %p453, %s26, 1
      %s455 = smul.addr %s454, 16
      %s456 = smul.addr %s455, 8
      %s457 = scalar_lea.vmem %s0, %s456
      %p458 = pneg %p47
      %p459 = pneg %p44
      %p460 = scmp.lt.s32.totalorder %s26, 1
      %s461 = scalar_select %p460, %s26, 1
      %s462 = smul.addr %s461, 16
      %s463 = smul.addr %s462, 4
      %s464 = scalar_lea.vmem %s1, %s463
      %p465 = pneg %p73
      %p466 = pneg %p70
      %p467 = pneg %p94
      %p468 = pneg %p91
      %p469 = pneg %p115
      %p470 = pneg %p112
      %p471 = pneg %p136
      %p472 = pneg %p133
      %p473 = pneg %p157
      %p474 = pneg %p154
      %p475 = pneg %p178
      %p476 = pneg %p175
      %p477 = pneg %p199
      %p478 = pneg %p196
      %p479 = pneg %p220
      %p480 = pneg %p217
      %p481 = pneg %p241
      %p482 = pneg %p238
      %p483 = pneg %p262
      %p484 = pneg %p259
      %p485 = pneg %p283
      %p486 = pneg %p280
      %p487 = pneg %p304
      %p488 = pneg %p301
      %p489 = pneg %p325
      %p490 = pneg %p322
      %p491 = pneg %p346
      %p492 = pneg %p343
      %p493 = pneg %p372
      %p494 = pneg %p369
      %p495 = scmp.lt.s32.totalorder %s26, 1
      %s496 = scalar_select %p495, %s26, 1
      %s497 = smul.addr %s496, 16
      %s498 = smul.addr %s497, 8
      %s499 = scalar_lea.vmem %s15, %s498
      %p500 = scmp.lt.s32.totalorder %s26, 1
      %s501 = scalar_select %p500, %s26, 1
      %s502 = smul.addr %s501, 16
      %s503 = smul.addr %s502, 8
      %s504 = scalar_lea.vmem %s0, %s503
      %p505 = scmp.lt.s32.totalorder %s26, 1
      %s506 = scalar_select %p505, %s26, 1
      %s507 = smul.addr %s506, 16
      %s508 = smul.addr %s507, 4
      %s509 = scalar_lea.vmem %s1, %s508
      %p510 = scmp.lt.s32.totalorder %s26, 1
      %s511 = scalar_select %p510, %s26, 1
      %s512 = smul.addr %s511, 16
      %s513 = smul.addr %s512, 8
      %s514 = scalar_lea.vmem %s15, %s513
      %v516 = vld [vmem:[%s509] sm:$0xf]
      %v517 = vld [vmem:[%s509 + $0x4] sm:$0xf]
      %v518 = vld [vmem:[%s509 + $0x8] sm:$0xf]
      %v519 = vld [vmem:[%s509 + $0xc] sm:$0xf]
      %v520 = vld [vmem:[%s509 + $0x10] sm:$0xf]
      %v521 = vld [vmem:[%s509 + $0x14] sm:$0xf]
      %v522 = vld [vmem:[%s509 + $0x18] sm:$0xf]
      %v523 = vld [vmem:[%s509 + $0x1c] sm:$0xf]
      %v524 = vld [vmem:[%s509 + $0x20] sm:$0xf]
      %v525 = vld [vmem:[%s509 + $0x24] sm:$0xf]
      %v526 = vld [vmem:[%s509 + $0x28] sm:$0xf]
      %v527 = vld [vmem:[%s509 + $0x2c] sm:$0xf]
      %v528 = vld [vmem:[%s509 + $0x30] sm:$0xf]
      %v529 = vld [vmem:[%s509 + $0x34] sm:$0xf]
      %v530 = vld [vmem:[%s509 + $0x38] sm:$0xf]
      %v531 = vld [vmem:[%s509 + $0x3c] sm:$0xf]
      %v532 = vld [vmem:[%s504] sm:$0xff]
      %v533 = vld [vmem:[%s504 + $0x8] sm:$0xff]
      %v534 = vld [vmem:[%s504 + $0x10] sm:$0xff]
      %v535 = vld [vmem:[%s504 + $0x18] sm:$0xff]
      %v536 = vld [vmem:[%s504 + $0x20] sm:$0xff]
      %v537 = vld [vmem:[%s504 + $0x28] sm:$0xff]
      %v538 = vld [vmem:[%s504 + $0x30] sm:$0xff]
      %v539 = vld [vmem:[%s504 + $0x38] sm:$0xff]
      %v540 = vld [vmem:[%s504 + $0x40] sm:$0xff]
      %v541 = vld [vmem:[%s504 + $0x48] sm:$0xff]
      %v542 = vld [vmem:[%s504 + $0x50] sm:$0xff]
      %v543 = vld [vmem:[%s504 + $0x58] sm:$0xff]
      %v544 = vld [vmem:[%s504 + $0x60] sm:$0xff]
      %v545 = vld [vmem:[%s504 + $0x68] sm:$0xff]
      %v546 = vld [vmem:[%s504 + $0x70] sm:$0xff]
      %v547 = vld [vmem:[%s504 + $0x78] sm:$0xff]
      %v548 = vpack.c.bf16 %v533, %v532
      %v549 = vpack.c.bf16 %v535, %v534
      %v550 = vpack.c.bf16 %v537, %v536
      %v551 = vpack.c.bf16 %v539, %v538
      %v552 = vpack.c.bf16 %v541, %v540
      %v553 = vpack.c.bf16 %v543, %v542
      %v554 = vpack.c.bf16 %v545, %v544
      %v555 = vpack.c.bf16 %v547, %v546
      %v572 = vunpack.c.l.b16 %v516
      %v573 = vunpack.c.l.b16 %v517
      %v574 = vunpack.c.l.b16 %v518
      %v575 = vunpack.c.l.b16 %v519
      %v576 = vunpack.c.l.b16 %v520
      %v577 = vunpack.c.l.b16 %v521
      %v578 = vunpack.c.l.b16 %v522
      %v579 = vunpack.c.l.b16 %v523
      %v580 = vunpack.c.l.b16 %v524
      %v581 = vunpack.c.l.b16 %v525
      %v582 = vunpack.c.l.b16 %v526
      %v583 = vunpack.c.l.b16 %v527
      %v584 = vunpack.c.l.b16 %v528
      %v585 = vunpack.c.l.b16 %v529
      %v586 = vunpack.c.l.b16 %v530
      %v587 = vunpack.c.l.b16 %v531
      %v588 = vpack.c.b16 %v573, %v572
      %v589 = vpack.c.b16 %v575, %v574
      %v590 = vpack.c.b16 %v577, %v576
      %v591 = vpack.c.b16 %v579, %v578
      %v592 = vpack.c.b16 %v581, %v580
      %v593 = vpack.c.b16 %v583, %v582
      %v594 = vpack.c.b16 %v585, %v584
      %v595 = vpack.c.b16 %v587, %v586
      %604 = vmatprep.subr.bf16.mxu0 0
      %605 = vmatpush1.bf16.msra.mxu0 %v555
      %606 = vmatprep.subr.bf16.mxu0 0
      %607 = vmatpush1.bf16.msra.mxu0 %v554
      %608 = vmatprep.subr.bf16.mxu0 0
      %609 = vmatpush1.bf16.msra.mxu0 %v553
      %610 = vmatprep.subr.bf16.mxu0 0
      %611 = vmatpush1.bf16.msra.mxu0 %v552
      %612 = vmatprep.subr.bf16.mxu0 0
      %613 = vmatpush1.bf16.msra.mxu0 %v551
      %614 = vmatprep.subr.bf16.mxu0 0
      %615 = vmatpush1.bf16.msra.mxu0 %v550
      %616 = vmatprep.subr.bf16.mxu0 0
      %617 = vmatpush1.bf16.msra.mxu0 %v549
      %618 = vmatprep.subr.bf16.mxu0 0
      %619 = vmatpush1.bf16.msra.mxu0 %v548
      %620 = vmatprep.subr.bf16.mxu0 0
      %621 = vmatpush2.bf16.msra.mxu0 0
      %622 = vmatprep.subr.bf16.mxu0 0
      %623 = vmatpush2.bf16.msra.mxu0 0
      %624 = vmatprep.subr.bf16.mxu0 0
      %625 = vmatpush2.bf16.msra.mxu0 0
      %626 = vmatprep.subr.bf16.mxu0 0
      %627 = vmatpush2.bf16.msra.mxu0 0
      %628 = vmatprep.subr.bf16.mxu0 0
      %629 = vmatpush2.bf16.msra.mxu0 0
      %630 = vmatprep.subr.bf16.mxu0 0
      %631 = vmatpush2.bf16.msra.mxu0 0
      %632 = vmatprep.subr.bf16.mxu0 0
      %633 = vmatpush2.bf16.msra.mxu0 0
      %634 = vmatprep.subr.bf16.mxu0 0
      %635 = vmatpush2.bf16.msra.mxu0 0
      %636 = vmatprep.mubr.bf16.mxu0 0
      %637 = vmatmul.mubr.bf16.gmra.mxu0 %v588
      %v638 = vpop.f32.mrf.mxu0
      %v639 = vadd.f32 0.0, %v638
      %v640 = vpop.f32.mrf.mxu0
      %v641 = vpop.f32.mrf.mxu0
      %v642 = vadd.f32 0.0, %v641
      %v643 = vpop.f32.mrf.mxu0
      %644 = vmatprep.mubr.bf16.mxu0 0
      %645 = vmatmul.mubr.bf16.gmra.mxu0 %v589
      %v646 = vpop.f32.mrf.mxu0
      %v647 = vadd.f32 0.0, %v646
      %v648 = vpop.f32.mrf.mxu0
      %v649 = vpop.f32.mrf.mxu0
      %v650 = vadd.f32 0.0, %v649
      %v651 = vpop.f32.mrf.mxu0
      %652 = vmatprep.mubr.bf16.mxu0 0
      %653 = vmatmul.mubr.bf16.gmra.mxu0 %v590
      %v654 = vpop.f32.mrf.mxu0
      %v655 = vadd.f32 0.0, %v654
      %v656 = vpop.f32.mrf.mxu0
      %v657 = vpop.f32.mrf.mxu0
      %v658 = vadd.f32 0.0, %v657
      %v659 = vpop.f32.mrf.mxu0
      %660 = vmatprep.mubr.bf16.mxu0 0
      %661 = vmatmul.mubr.bf16.gmra.mxu0 %v591
      %v662 = vpop.f32.mrf.mxu0
      %v663 = vadd.f32 0.0, %v662
      %v664 = vpop.f32.mrf.mxu0
      %v665 = vpop.f32.mrf.mxu0
      %v666 = vadd.f32 0.0, %v665
      %v667 = vpop.f32.mrf.mxu0
      %668 = vmatprep.mubr.bf16.mxu0 0
      %669 = vmatmul.mubr.bf16.gmra.mxu0 %v592
      %v670 = vpop.f32.mrf.mxu0
      %v671 = vadd.f32 0.0, %v670
      %v672 = vpop.f32.mrf.mxu0
      %v673 = vpop.f32.mrf.mxu0
      %v674 = vadd.f32 0.0, %v673
      %v675 = vpop.f32.mrf.mxu0
      %676 = vmatprep.mubr.bf16.mxu0 0
      %677 = vmatmul.mubr.bf16.gmra.mxu0 %v593
      %v678 = vpop.f32.mrf.mxu0
      %v679 = vadd.f32 0.0, %v678
      %v680 = vpop.f32.mrf.mxu0
      %v681 = vpop.f32.mrf.mxu0
      %v682 = vadd.f32 0.0, %v681
      %v683 = vpop.f32.mrf.mxu0
      %684 = vmatprep.mubr.bf16.mxu0 0
      %685 = vmatmul.mubr.bf16.gmra.mxu0 %v594
      %v686 = vpop.f32.mrf.mxu0
      %v687 = vadd.f32 0.0, %v686
      %v688 = vpop.f32.mrf.mxu0
      %v689 = vpop.f32.mrf.mxu0
      %v690 = vadd.f32 0.0, %v689
      %v691 = vpop.f32.mrf.mxu0
      %692 = vmatprep.mubr.bf16.mxu0 0
      %693 = vmatmul.mubr.bf16.gmra.mxu0 %v595
      %v694 = vpop.f32.mrf.mxu0
      %v695 = vadd.f32 0.0, %v694
      %v696 = vpop.f32.mrf.mxu0
      %v697 = vpop.f32.mrf.mxu0
      %v698 = vadd.f32 0.0, %v697
      %v699 = vpop.f32.mrf.mxu0
      %700 = vdwg.mxu0
      %717 = vrot.lane.b32.xlu0 %v639, 32
      %v718 = vpop.permute.xlu0 %717
      %719 = vrot.lane.b32.xlu0 %v642, 32
      %v720 = vpop.permute.xlu0 %719
      %721 = vrot.lane.b32.xlu0 %v647, 32
      %v722 = vpop.permute.xlu0 %721
      %723 = vrot.lane.b32.xlu0 %v650, 32
      %v724 = vpop.permute.xlu0 %723
      %725 = vrot.lane.b32.xlu0 %v655, 32
      %v726 = vpop.permute.xlu0 %725
      %727 = vrot.lane.b32.xlu0 %v658, 32
      %v728 = vpop.permute.xlu0 %727
      %729 = vrot.lane.b32.xlu0 %v663, 32
      %v730 = vpop.permute.xlu0 %729
      %731 = vrot.lane.b32.xlu0 %v666, 32
      %v732 = vpop.permute.xlu0 %731
      %733 = vrot.lane.b32.xlu0 %v671, 32
      %v734 = vpop.permute.xlu0 %733
      %735 = vrot.lane.b32.xlu0 %v674, 32
      %v736 = vpop.permute.xlu0 %735
      %737 = vrot.lane.b32.xlu0 %v679, 32
      %v738 = vpop.permute.xlu0 %737
      %739 = vrot.lane.b32.xlu0 %v682, 32
      %v740 = vpop.permute.xlu0 %739
      %741 = vrot.lane.b32.xlu0 %v687, 32
      %v742 = vpop.permute.xlu0 %741
      %743 = vrot.lane.b32.xlu0 %v690, 32
      %v744 = vpop.permute.xlu0 %743
      %745 = vrot.lane.b32.xlu0 %v695, 32
      %v746 = vpop.permute.xlu0 %745
      %747 = vrot.lane.b32.xlu0 %v698, 32
      %v748 = vpop.permute.xlu0 %747
      %vm765 = vcmask 261120
      %v766 = vsel %vm765, %v532, %v718
      %v767 = vsel %vm765, %v533, %v720
      %v768 = vsel %vm765, %v534, %v722
      %v769 = vsel %vm765, %v535, %v724
      %v770 = vsel %vm765, %v536, %v726
      %v771 = vsel %vm765, %v537, %v728
      %v772 = vsel %vm765, %v538, %v730
      %v773 = vsel %vm765, %v539, %v732
      %v774 = vsel %vm765, %v540, %v734
      %v775 = vsel %vm765, %v541, %v736
      %v776 = vsel %vm765, %v542, %v738
      %v777 = vsel %vm765, %v543, %v740
      %v778 = vsel %vm765, %v544, %v742
      %v779 = vsel %vm765, %v545, %v744
      %v780 = vsel %vm765, %v546, %v746
      %v781 = vsel %vm765, %v547, %v748
      %v782 = vpack.c.bf16 %v767, %v766
      %v783 = vpack.c.bf16 %v769, %v768
      %v784 = vpack.c.bf16 %v771, %v770
      %v785 = vpack.c.bf16 %v773, %v772
      %v786 = vpack.c.bf16 %v775, %v774
      %v787 = vpack.c.bf16 %v777, %v776
      %v788 = vpack.c.bf16 %v779, %v778
      %v789 = vpack.c.bf16 %v781, %v780
      %v790 = vld [vmem:[%s2] sm:$0xf]
      %v791 = vld [vmem:[%s2 + $0x4] sm:$0xf]
      %v792 = vld [vmem:[%s2 + $0x8] sm:$0xf]
      %v793 = vld [vmem:[%s2 + $0xc] sm:$0xf]
      %v794 = vld [vmem:[%s2 + $0x10] sm:$0xf]
      %v795 = vld [vmem:[%s2 + $0x14] sm:$0xf]
      %v796 = vld [vmem:[%s2 + $0x18] sm:$0xf]
      %v797 = vld [vmem:[%s2 + $0x1c] sm:$0xf]
      %v798 = vld [vmem:[%s3] sm:$0x1]
      %v800 = vlaneseq
      %v801 = vshrl.u32 %v800, 7
      %v802 = vsub.s32 0, %v801
      %v803 = vrot.slane %v798, %v802
      %v813 = vunpack.c.l.b16 %v790
      %v814 = vunpack.c.l.b16 %v791
      %v815 = vunpack.c.l.b16 %v792
      %v816 = vunpack.c.l.b16 %v793
      %v817 = vunpack.c.l.b16 %v794
      %v818 = vunpack.c.l.b16 %v795
      %v819 = vunpack.c.l.b16 %v796
      %v820 = vunpack.c.l.b16 %v797
      %v821 = vpack.c.b16 %v814, %v813
      %v822 = vpack.c.b16 %v816, %v815
      %v823 = vpack.c.b16 %v818, %v817
      %v824 = vpack.c.b16 %v820, %v819
      %vm829 = vcmask 523264
      %v831 = vsel %vm829, %v782, 0
      %v834 = vsel %vm829, %v783, 0
      %v837 = vsel %vm829, %v784, 0
      %v840 = vsel %vm829, %v785, 0
      %v843 = vsel %vm829, %v786, 0
      %v846 = vsel %vm829, %v787, 0
      %v849 = vsel %vm829, %v788, 0
      %v852 = vsel %vm829, %v789, 0
      %854 = vmatprep.subr.bf16.mxu0 0
      %855 = vmatpush1.bf16.msra.mxu0 0
      %856 = vmatprep.subr.bf16.mxu0 0
      %857 = vmatpush1.bf16.msra.mxu0 0
      %858 = vmatprep.subr.bf16.mxu0 0
      %859 = vmatpush1.bf16.msra.mxu0 0
      %860 = vmatprep.subr.bf16.mxu0 0
      %861 = vmatpush1.bf16.msra.mxu0 0
      %862 = vmatprep.subr.bf16.mxu0 0
      %863 = vmatpush1.bf16.msra.mxu0 %v824
      %864 = vmatprep.subr.bf16.mxu0 0
      %865 = vmatpush1.bf16.msra.mxu0 %v823
      %866 = vmatprep.subr.bf16.mxu0 0
      %867 = vmatpush1.bf16.msra.mxu0 %v822
      %868 = vmatprep.subr.bf16.mxu0 0
      %869 = vmatpush1.bf16.msra.mxu0 %v821
      %870 = vmatprep.subr.bf16.mxu0 0
      %871 = vmatpush2.bf16.msra.mxu0 0
      %872 = vmatprep.subr.bf16.mxu0 0
      %873 = vmatpush2.bf16.msra.mxu0 0
      %874 = vmatprep.subr.bf16.mxu0 0
      %875 = vmatpush2.bf16.msra.mxu0 0
      %876 = vmatprep.subr.bf16.mxu0 0
      %877 = vmatpush2.bf16.msra.mxu0 0
      %878 = vmatprep.subr.bf16.mxu0 0
      %879 = vmatpush2.bf16.msra.mxu0 0
      %880 = vmatprep.subr.bf16.mxu0 0
      %881 = vmatpush2.bf16.msra.mxu0 0
      %882 = vmatprep.subr.bf16.mxu0 0
      %883 = vmatpush2.bf16.msra.mxu0 0
      %884 = vmatprep.subr.bf16.mxu0 0
      %885 = vmatpush2.bf16.msra.mxu0 0
      %886 = vmatprep.mubr.bf16.mxu0 0
      %887 = vmatmul.mubr.bf16.gmra.mxu0 %v831
      %v888 = vpop.f32.mrf.mxu0
      %v889 = vadd.f32 %v803, %v888
      %v890 = vpop.f32.mrf.mxu0
      %v891 = vpop.f32.mrf.mxu0
      %v892 = vadd.f32 %v803, %v891
      %v893 = vpop.f32.mrf.mxu0
      %894 = vmatprep.mubr.bf16.mxu0 0
      %895 = vmatmul.mubr.bf16.gmra.mxu0 %v834
      %v896 = vpop.f32.mrf.mxu0
      %v897 = vadd.f32 %v803, %v896
      %v898 = vpop.f32.mrf.mxu0
      %v899 = vpop.f32.mrf.mxu0
      %v900 = vadd.f32 %v803, %v899
      %v901 = vpop.f32.mrf.mxu0
      %902 = vmatprep.mubr.bf16.mxu0 0
      %903 = vmatmul.mubr.bf16.gmra.mxu0 %v837
      %v904 = vpop.f32.mrf.mxu0
      %v905 = vadd.f32 %v803, %v904
      %v906 = vpop.f32.mrf.mxu0
      %v907 = vpop.f32.mrf.mxu0
      %v908 = vadd.f32 %v803, %v907
      %v909 = vpop.f32.mrf.mxu0
      %910 = vmatprep.mubr.bf16.mxu0 0
      %911 = vmatmul.mubr.bf16.gmra.mxu0 %v840
      %v912 = vpop.f32.mrf.mxu0
      %v913 = vadd.f32 %v803, %v912
      %v914 = vpop.f32.mrf.mxu0
      %v915 = vpop.f32.mrf.mxu0
      %v916 = vadd.f32 %v803, %v915
      %v917 = vpop.f32.mrf.mxu0
      %918 = vmatprep.mubr.bf16.mxu0 0
      %919 = vmatmul.mubr.bf16.gmra.mxu0 %v843
      %v920 = vpop.f32.mrf.mxu0
      %v921 = vadd.f32 %v803, %v920
      %v922 = vpop.f32.mrf.mxu0
      %v923 = vpop.f32.mrf.mxu0
      %v924 = vadd.f32 %v803, %v923
      %v925 = vpop.f32.mrf.mxu0
      %926 = vmatprep.mubr.bf16.mxu0 0
      %927 = vmatmul.mubr.bf16.gmra.mxu0 %v846
      %v928 = vpop.f32.mrf.mxu0
      %v929 = vadd.f32 %v803, %v928
      %v930 = vpop.f32.mrf.mxu0
      %v931 = vpop.f32.mrf.mxu0
      %v932 = vadd.f32 %v803, %v931
      %v933 = vpop.f32.mrf.mxu0
      %934 = vmatprep.mubr.bf16.mxu0 0
      %935 = vmatmul.mubr.bf16.gmra.mxu0 %v849
      %v936 = vpop.f32.mrf.mxu0
      %v937 = vadd.f32 %v803, %v936
      %v938 = vpop.f32.mrf.mxu0
      %v939 = vpop.f32.mrf.mxu0
      %v940 = vadd.f32 %v803, %v939
      %v941 = vpop.f32.mrf.mxu0
      %942 = vmatprep.mubr.bf16.mxu0 0
      %943 = vmatmul.mubr.bf16.gmra.mxu0 %v852
      %v944 = vpop.f32.mrf.mxu0
      %v945 = vadd.f32 %v803, %v944
      %v946 = vpop.f32.mrf.mxu0
      %v947 = vpop.f32.mrf.mxu0
      %v948 = vadd.f32 %v803, %v947
      %v949 = vpop.f32.mrf.mxu0
      %950 = vdwg.mxu0
      %v951 = vmax.f32 %v889, 0.0
      %v952 = vmax.f32 %v892, 0.0
      %v953 = vmax.f32 %v897, 0.0
      %v954 = vmax.f32 %v900, 0.0
      %v955 = vmax.f32 %v905, 0.0
      %v956 = vmax.f32 %v908, 0.0
      %v957 = vmax.f32 %v913, 0.0
      %v958 = vmax.f32 %v916, 0.0
      %v959 = vmax.f32 %v921, 0.0
      %v960 = vmax.f32 %v924, 0.0
      %v961 = vmax.f32 %v929, 0.0
      %v962 = vmax.f32 %v932, 0.0
      %v963 = vmax.f32 %v937, 0.0
      %v964 = vmax.f32 %v940, 0.0
      %v965 = vmax.f32 %v945, 0.0
      %v966 = vmax.f32 %v948, 0.0
      %v967 = vpack.c.bf16 %v952, %v951
      %v968 = vpack.c.bf16 %v954, %v953
      %v969 = vpack.c.bf16 %v956, %v955
      %v970 = vpack.c.bf16 %v958, %v957
      %v971 = vpack.c.bf16 %v960, %v959
      %v972 = vpack.c.bf16 %v962, %v961
      %v973 = vpack.c.bf16 %v964, %v963
      %v974 = vpack.c.bf16 %v966, %v965
      %975 = vmatprep.subr.bf16.mxu0 0
      %976 = vmatpush1.bf16.msra.mxu0 %v974
      %977 = vmatprep.subr.bf16.mxu0 0
      %978 = vmatpush1.bf16.msra.mxu0 %v973
      %979 = vmatprep.subr.bf16.mxu0 0
      %980 = vmatpush1.bf16.msra.mxu0 %v972
      %981 = vmatprep.subr.bf16.mxu0 0
      %982 = vmatpush1.bf16.msra.mxu0 %v971
      %983 = vmatprep.subr.bf16.mxu0 0
      %984 = vmatpush1.bf16.msra.mxu0 %v970
      %985 = vmatprep.subr.bf16.mxu0 0
      %986 = vmatpush1.bf16.msra.mxu0 %v969
      %987 = vmatprep.subr.bf16.mxu0 0
      %988 = vmatpush1.bf16.msra.mxu0 %v968
      %989 = vmatprep.subr.bf16.mxu0 0
      %990 = vmatpush1.bf16.msra.mxu0 %v967
      %991 = vmatprep.subr.bf16.mxu0 0
      %992 = vmatpush2.bf16.msra.mxu0 0
      %993 = vmatprep.subr.bf16.mxu0 0
      %994 = vmatpush2.bf16.msra.mxu0 0
      %995 = vmatprep.subr.bf16.mxu0 0
      %996 = vmatpush2.bf16.msra.mxu0 0
      %997 = vmatprep.subr.bf16.mxu0 0
      %998 = vmatpush2.bf16.msra.mxu0 0
      %999 = vmatprep.subr.bf16.mxu0 0
      %1000 = vmatpush2.bf16.msra.mxu0 0
      %1001 = vmatprep.subr.bf16.mxu0 0
      %1002 = vmatpush2.bf16.msra.mxu0 0
      %1003 = vmatprep.subr.bf16.mxu0 0
      %1004 = vmatpush2.bf16.msra.mxu0 0
      %1005 = vmatprep.subr.bf16.mxu0 0
      %1006 = vmatpush2.bf16.msra.mxu0 0
      %1007 = vmatprep.mubr.bf16.mxu0 0
      %1008 = vmatmul.mubr.bf16.gmra.mxu0 %v588
      %v1009 = vpop.f32.mrf.mxu0
      %v1010 = vadd.f32 0.0, %v1009
      %v1011 = vpop.f32.mrf.mxu0
      %v1012 = vpop.f32.mrf.mxu0
      %v1013 = vadd.f32 0.0, %v1012
      %v1014 = vpop.f32.mrf.mxu0
      %1015 = vmatprep.mubr.bf16.mxu0 0
      %1016 = vmatmul.mubr.bf16.gmra.mxu0 %v589
      %v1017 = vpop.f32.mrf.mxu0
      %v1018 = vadd.f32 0.0, %v1017
      %v1019 = vpop.f32.mrf.mxu0
      %v1020 = vpop.f32.mrf.mxu0
      %v1021 = vadd.f32 0.0, %v1020
      %v1022 = vpop.f32.mrf.mxu0
      %1023 = vmatprep.mubr.bf16.mxu0 0
      %1024 = vmatmul.mubr.bf16.gmra.mxu0 %v590
      %v1025 = vpop.f32.mrf.mxu0
      %v1026 = vadd.f32 0.0, %v1025
      %v1027 = vpop.f32.mrf.mxu0
      %v1028 = vpop.f32.mrf.mxu0
      %v1029 = vadd.f32 0.0, %v1028
      %v1030 = vpop.f32.mrf.mxu0
      %1031 = vmatprep.mubr.bf16.mxu0 0
      %1032 = vmatmul.mubr.bf16.gmra.mxu0 %v591
      %v1033 = vpop.f32.mrf.mxu0
      %v1034 = vadd.f32 0.0, %v1033
      %v1035 = vpop.f32.mrf.mxu0
      %v1036 = vpop.f32.mrf.mxu0
      %v1037 = vadd.f32 0.0, %v1036
      %v1038 = vpop.f32.mrf.mxu0
      %1039 = vmatprep.mubr.bf16.mxu0 0
      %1040 = vmatmul.mubr.bf16.gmra.mxu0 %v592
      %v1041 = vpop.f32.mrf.mxu0
      %v1042 = vadd.f32 0.0, %v1041
      %v1043 = vpop.f32.mrf.mxu0
      %v1044 = vpop.f32.mrf.mxu0
      %v1045 = vadd.f32 0.0, %v1044
      %v1046 = vpop.f32.mrf.mxu0
      %1047 = vmatprep.mubr.bf16.mxu0 0
      %1048 = vmatmul.mubr.bf16.gmra.mxu0 %v593
      %v1049 = vpop.f32.mrf.mxu0
      %v1050 = vadd.f32 0.0, %v1049
      %v1051 = vpop.f32.mrf.mxu0
      %v1052 = vpop.f32.mrf.mxu0
      %v1053 = vadd.f32 0.0, %v1052
      %v1054 = vpop.f32.mrf.mxu0
      %1055 = vmatprep.mubr.bf16.mxu0 0
      %1056 = vmatmul.mubr.bf16.gmra.mxu0 %v594
      %v1057 = vpop.f32.mrf.mxu0
      %v1058 = vadd.f32 0.0, %v1057
      %v1059 = vpop.f32.mrf.mxu0
      %v1060 = vpop.f32.mrf.mxu0
      %v1061 = vadd.f32 0.0, %v1060
      %v1062 = vpop.f32.mrf.mxu0
      %1063 = vmatprep.mubr.bf16.mxu0 0
      %1064 = vmatmul.mubr.bf16.gmra.mxu0 %v595
      %v1065 = vpop.f32.mrf.mxu0
      %v1066 = vadd.f32 0.0, %v1065
      %v1067 = vpop.f32.mrf.mxu0
      %v1068 = vpop.f32.mrf.mxu0
      %v1069 = vadd.f32 0.0, %v1068
      %v1070 = vpop.f32.mrf.mxu0
      %1071 = vdwg.mxu0
      %1088 = vrot.lane.b32.xlu0 %v1010, 64
      %v1089 = vpop.permute.xlu0 %1088
      %1090 = vrot.lane.b32.xlu0 %v1013, 64
      %v1091 = vpop.permute.xlu0 %1090
      %1092 = vrot.lane.b32.xlu0 %v1018, 64
      %v1093 = vpop.permute.xlu0 %1092
      %1094 = vrot.lane.b32.xlu0 %v1021, 64
      %v1095 = vpop.permute.xlu0 %1094
      %1096 = vrot.lane.b32.xlu0 %v1026, 64
      %v1097 = vpop.permute.xlu0 %1096
      %1098 = vrot.lane.b32.xlu0 %v1029, 64
      %v1099 = vpop.permute.xlu0 %1098
      %1100 = vrot.lane.b32.xlu0 %v1034, 64
      %v1101 = vpop.permute.xlu0 %1100
      %1102 = vrot.lane.b32.xlu0 %v1037, 64
      %v1103 = vpop.permute.xlu0 %1102
      %1104 = vrot.lane.b32.xlu0 %v1042, 64
      %v1105 = vpop.permute.xlu0 %1104
      %1106 = vrot.lane.b32.xlu0 %v1045, 64
      %v1107 = vpop.permute.xlu0 %1106
      %1108 = vrot.lane.b32.xlu0 %v1050, 64
      %v1109 = vpop.permute.xlu0 %1108
      %1110 = vrot.lane.b32.xlu0 %v1053, 64
      %v1111 = vpop.permute.xlu0 %1110
      %1112 = vrot.lane.b32.xlu0 %v1058, 64
      %v1113 = vpop.permute.xlu0 %1112
      %1114 = vrot.lane.b32.xlu0 %v1061, 64
      %v1115 = vpop.permute.xlu0 %1114
      %1116 = vrot.lane.b32.xlu0 %v1066, 64
      %v1117 = vpop.permute.xlu0 %1116
      %1118 = vrot.lane.b32.xlu0 %v1069, 64
      %v1119 = vpop.permute.xlu0 %1118
      %v1136 = vsel %vm829, %v951, %v1089
      %v1137 = vsel %vm829, %v952, %v1091
      %v1138 = vsel %vm829, %v953, %v1093
      %v1139 = vsel %vm829, %v954, %v1095
      %v1140 = vsel %vm829, %v955, %v1097
      %v1141 = vsel %vm829, %v956, %v1099
      %v1142 = vsel %vm829, %v957, %v1101
      %v1143 = vsel %vm829, %v958, %v1103
      %v1144 = vsel %vm829, %v959, %v1105
      %v1145 = vsel %vm829, %v960, %v1107
      %v1146 = vsel %vm829, %v961, %v1109
      %v1147 = vsel %vm829, %v962, %v1111
      %v1148 = vsel %vm829, %v963, %v1113
      %v1149 = vsel %vm829, %v964, %v1115
      %v1150 = vsel %vm829, %v965, %v1117
      %v1151 = vsel %vm829, %v966, %v1119
      %v1152 = vpack.c.bf16 %v1137, %v1136
      %v1153 = vpack.c.bf16 %v1139, %v1138
      %v1154 = vpack.c.bf16 %v1141, %v1140
      %v1155 = vpack.c.bf16 %v1143, %v1142
      %v1156 = vpack.c.bf16 %v1145, %v1144
      %v1157 = vpack.c.bf16 %v1147, %v1146
      %v1158 = vpack.c.bf16 %v1149, %v1148
      %v1159 = vpack.c.bf16 %v1151, %v1150
      %v1160 = vld [vmem:[%s4] sm:$0xf]
      %v1161 = vld [vmem:[%s4 + $0x4] sm:$0xf]
      %v1162 = vld [vmem:[%s4 + $0x8] sm:$0xf]
      %v1163 = vld [vmem:[%s4 + $0xc] sm:$0xf]
      %v1164 = vld [vmem:[%s4 + $0x10] sm:$0xf]
      %v1165 = vld [vmem:[%s4 + $0x14] sm:$0xf]
      %v1166 = vld [vmem:[%s4 + $0x18] sm:$0xf]
      %v1167 = vld [vmem:[%s4 + $0x1c] sm:$0xf]
      %v1168 = vld [vmem:[%s4 + $0x20] sm:$0xf]
      %v1169 = vld [vmem:[%s4 + $0x24] sm:$0xf]
      %v1170 = vld [vmem:[%s4 + $0x28] sm:$0xf]
      %v1171 = vld [vmem:[%s4 + $0x2c] sm:$0xf]
      %v1172 = vld [vmem:[%s4 + $0x30] sm:$0xf]
      %v1173 = vld [vmem:[%s4 + $0x34] sm:$0xf]
      %v1174 = vld [vmem:[%s4 + $0x38] sm:$0xf]
      %v1175 = vld [vmem:[%s4 + $0x3c] sm:$0xf]
      %v1176 = vld [vmem:[%s5] sm:$0x1]
      %v1178 = vlaneseq
      %v1179 = vshrl.u32 %v1178, 7
      %v1180 = vsub.s32 0, %v1179
      %v1181 = vrot.slane %v1176, %v1180
      %v1199 = vunpack.c.l.b16 %v1160
      %v1200 = vunpack.c.l.b16 %v1161
      %v1201 = vunpack.c.l.b16 %v1162
      %v1202 = vunpack.c.l.b16 %v1163
      %v1203 = vunpack.c.l.b16 %v1164
      %v1204 = vunpack.c.l.b16 %v1165
      %v1205 = vunpack.c.l.b16 %v1166
      %v1206 = vunpack.c.l.b16 %v1167
      %v1207 = vunpack.c.l.b16 %v1168
      %v1208 = vunpack.c.l.b16 %v1169
      %v1209 = vunpack.c.l.b16 %v1170
      %v1210 = vunpack.c.l.b16 %v1171
      %v1211 = vunpack.c.l.b16 %v1172
      %v1212 = vunpack.c.l.b16 %v1173
      %v1213 = vunpack.c.l.b16 %v1174
      %v1214 = vunpack.c.l.b16 %v1175
      %v1215 = vpack.c.b16 %v1200, %v1199
      %v1216 = vpack.c.b16 %v1202, %v1201
      %v1217 = vpack.c.b16 %v1204, %v1203
      %v1218 = vpack.c.b16 %v1206, %v1205
      %v1219 = vpack.c.b16 %v1208, %v1207
      %v1220 = vpack.c.b16 %v1210, %v1209
      %v1221 = vpack.c.b16 %v1212, %v1211
      %v1222 = vpack.c.b16 %v1214, %v1213
      %1231 = vmatprep.subr.bf16.mxu0 0
      %1232 = vmatpush1.bf16.msra.mxu0 %v1222
      %1233 = vmatprep.subr.bf16.mxu0 0
      %1234 = vmatpush1.bf16.msra.mxu0 %v1221
      %1235 = vmatprep.subr.bf16.mxu0 0
      %1236 = vmatpush1.bf16.msra.mxu0 %v1220
      %1237 = vmatprep.subr.bf16.mxu0 0
      %1238 = vmatpush1.bf16.msra.mxu0 %v1219
      %1239 = vmatprep.subr.bf16.mxu0 0
      %1240 = vmatpush1.bf16.msra.mxu0 %v1218
      %1241 = vmatprep.subr.bf16.mxu0 0
      %1242 = vmatpush1.bf16.msra.mxu0 %v1217
      %1243 = vmatprep.subr.bf16.mxu0 0
      %1244 = vmatpush1.bf16.msra.mxu0 %v1216
      %1245 = vmatprep.subr.bf16.mxu0 0
      %1246 = vmatpush1.bf16.msra.mxu0 %v1215
      %1247 = vmatprep.subr.bf16.mxu0 0
      %1248 = vmatpush2.bf16.msra.mxu0 0
      %1249 = vmatprep.subr.bf16.mxu0 0
      %1250 = vmatpush2.bf16.msra.mxu0 0
      %1251 = vmatprep.subr.bf16.mxu0 0
      %1252 = vmatpush2.bf16.msra.mxu0 0
      %1253 = vmatprep.subr.bf16.mxu0 0
      %1254 = vmatpush2.bf16.msra.mxu0 0
      %1255 = vmatprep.subr.bf16.mxu0 0
      %1256 = vmatpush2.bf16.msra.mxu0 0
      %1257 = vmatprep.subr.bf16.mxu0 0
      %1258 = vmatpush2.bf16.msra.mxu0 0
      %1259 = vmatprep.subr.bf16.mxu0 0
      %1260 = vmatpush2.bf16.msra.mxu0 0
      %1261 = vmatprep.subr.bf16.mxu0 0
      %1262 = vmatpush2.bf16.msra.mxu0 0
      %1263 = vmatprep.mubr.bf16.mxu0 0
      %1264 = vmatmul.mubr.bf16.gmra.mxu0 %v1152
      %v1265 = vpop.f32.mrf.mxu0
      %v1266 = vadd.f32 %v1181, %v1265
      %v1267 = vpop.f32.mrf.mxu0
      %v1268 = vpop.f32.mrf.mxu0
      %v1269 = vadd.f32 %v1181, %v1268
      %v1270 = vpop.f32.mrf.mxu0
      %1271 = vmatprep.mubr.bf16.mxu0 0
      %1272 = vmatmul.mubr.bf16.gmra.mxu0 %v1153
      %v1273 = vpop.f32.mrf.mxu0
      %v1274 = vadd.f32 %v1181, %v1273
      %v1275 = vpop.f32.mrf.mxu0
      %v1276 = vpop.f32.mrf.mxu0
      %v1277 = vadd.f32 %v1181, %v1276
      %v1278 = vpop.f32.mrf.mxu0
      %1279 = vmatprep.mubr.bf16.mxu0 0
      %1280 = vmatmul.mubr.bf16.gmra.mxu0 %v1154
      %v1281 = vpop.f32.mrf.mxu0
      %v1282 = vadd.f32 %v1181, %v1281
      %v1283 = vpop.f32.mrf.mxu0
      %v1284 = vpop.f32.mrf.mxu0
      %v1285 = vadd.f32 %v1181, %v1284
      %v1286 = vpop.f32.mrf.mxu0
      %1287 = vmatprep.mubr.bf16.mxu0 0
      %1288 = vmatmul.mubr.bf16.gmra.mxu0 %v1155
      %v1289 = vpop.f32.mrf.mxu0
      %v1290 = vadd.f32 %v1181, %v1289
      %v1291 = vpop.f32.mrf.mxu0
      %v1292 = vpop.f32.mrf.mxu0
      %v1293 = vadd.f32 %v1181, %v1292
      %v1294 = vpop.f32.mrf.mxu0
      %1295 = vmatprep.mubr.bf16.mxu0 0
      %1296 = vmatmul.mubr.bf16.gmra.mxu0 %v1156
      %v1297 = vpop.f32.mrf.mxu0
      %v1298 = vadd.f32 %v1181, %v1297
      %v1299 = vpop.f32.mrf.mxu0
      %v1300 = vpop.f32.mrf.mxu0
      %v1301 = vadd.f32 %v1181, %v1300
      %v1302 = vpop.f32.mrf.mxu0
      %1303 = vmatprep.mubr.bf16.mxu0 0
      %1304 = vmatmul.mubr.bf16.gmra.mxu0 %v1157
      %v1305 = vpop.f32.mrf.mxu0
      %v1306 = vadd.f32 %v1181, %v1305
      %v1307 = vpop.f32.mrf.mxu0
      %v1308 = vpop.f32.mrf.mxu0
      %v1309 = vadd.f32 %v1181, %v1308
      %v1310 = vpop.f32.mrf.mxu0
      %1311 = vmatprep.mubr.bf16.mxu0 0
      %1312 = vmatmul.mubr.bf16.gmra.mxu0 %v1158
      %v1313 = vpop.f32.mrf.mxu0
      %v1314 = vadd.f32 %v1181, %v1313
      %v1315 = vpop.f32.mrf.mxu0
      %v1316 = vpop.f32.mrf.mxu0
      %v1317 = vadd.f32 %v1181, %v1316
      %v1318 = vpop.f32.mrf.mxu0
      %1319 = vmatprep.mubr.bf16.mxu0 0
      %1320 = vmatmul.mubr.bf16.gmra.mxu0 %v1159
      %v1321 = vpop.f32.mrf.mxu0
      %v1322 = vadd.f32 %v1181, %v1321
      %v1323 = vpop.f32.mrf.mxu0
      %v1324 = vpop.f32.mrf.mxu0
      %v1325 = vadd.f32 %v1181, %v1324
      %v1326 = vpop.f32.mrf.mxu0
      %1327 = vdwg.mxu0
      %v1328 = vmax.f32 %v1266, 0.0
      %v1329 = vmax.f32 %v1269, 0.0
      %v1330 = vmax.f32 %v1274, 0.0
      %v1331 = vmax.f32 %v1277, 0.0
      %v1332 = vmax.f32 %v1282, 0.0
      %v1333 = vmax.f32 %v1285, 0.0
      %v1334 = vmax.f32 %v1290, 0.0
      %v1335 = vmax.f32 %v1293, 0.0
      %v1336 = vmax.f32 %v1298, 0.0
      %v1337 = vmax.f32 %v1301, 0.0
      %v1338 = vmax.f32 %v1306, 0.0
      %v1339 = vmax.f32 %v1309, 0.0
      %v1340 = vmax.f32 %v1314, 0.0
      %v1341 = vmax.f32 %v1317, 0.0
      %v1342 = vmax.f32 %v1322, 0.0
      %v1343 = vmax.f32 %v1325, 0.0
      %v1344 = vpack.c.bf16 %v1329, %v1328
      %v1345 = vpack.c.bf16 %v1331, %v1330
      %v1346 = vpack.c.bf16 %v1333, %v1332
      %v1347 = vpack.c.bf16 %v1335, %v1334
      %v1348 = vpack.c.bf16 %v1337, %v1336
      %v1349 = vpack.c.bf16 %v1339, %v1338
      %v1350 = vpack.c.bf16 %v1341, %v1340
      %v1351 = vpack.c.bf16 %v1343, %v1342
      %1352 = vmatprep.subr.bf16.mxu0 0
      %1353 = vmatpush1.bf16.msra.mxu0 %v1351
      %1354 = vmatprep.subr.bf16.mxu0 0
      %1355 = vmatpush1.bf16.msra.mxu0 %v1350
      %1356 = vmatprep.subr.bf16.mxu0 0
      %1357 = vmatpush1.bf16.msra.mxu0 %v1349
      %1358 = vmatprep.subr.bf16.mxu0 0
      %1359 = vmatpush1.bf16.msra.mxu0 %v1348
      %1360 = vmatprep.subr.bf16.mxu0 0
      %1361 = vmatpush1.bf16.msra.mxu0 %v1347
      %1362 = vmatprep.subr.bf16.mxu0 0
      %1363 = vmatpush1.bf16.msra.mxu0 %v1346
      %1364 = vmatprep.subr.bf16.mxu0 0
      %1365 = vmatpush1.bf16.msra.mxu0 %v1345
      %1366 = vmatprep.subr.bf16.mxu0 0
      %1367 = vmatpush1.bf16.msra.mxu0 %v1344
      %1368 = vmatprep.subr.bf16.mxu0 0
      %1369 = vmatpush2.bf16.msra.mxu0 0
      %1370 = vmatprep.subr.bf16.mxu0 0
      %1371 = vmatpush2.bf16.msra.mxu0 0
      %1372 = vmatprep.subr.bf16.mxu0 0
      %1373 = vmatpush2.bf16.msra.mxu0 0
      %1374 = vmatprep.subr.bf16.mxu0 0
      %1375 = vmatpush2.bf16.msra.mxu0 0
      %1376 = vmatprep.subr.bf16.mxu0 0
      %1377 = vmatpush2.bf16.msra.mxu0 0
      %1378 = vmatprep.subr.bf16.mxu0 0
      %1379 = vmatpush2.bf16.msra.mxu0 0
      %1380 = vmatprep.subr.bf16.mxu0 0
      %1381 = vmatpush2.bf16.msra.mxu0 0
      %1382 = vmatprep.subr.bf16.mxu0 0
      %1383 = vmatpush2.bf16.msra.mxu0 0
      %1384 = vmatprep.mubr.bf16.mxu0 0
      %1385 = vmatmul.mubr.bf16.gmra.mxu0 %v588
      %v1386 = vpop.f32.mrf.mxu0
      %v1387 = vadd.f32 0.0, %v1386
      %v1388 = vpop.f32.mrf.mxu0
      %v1389 = vpop.f32.mrf.mxu0
      %v1390 = vadd.f32 0.0, %v1389
      %v1391 = vpop.f32.mrf.mxu0
      %1392 = vmatprep.mubr.bf16.mxu0 0
      %1393 = vmatmul.mubr.bf16.gmra.mxu0 %v589
      %v1394 = vpop.f32.mrf.mxu0
      %v1395 = vadd.f32 0.0, %v1394
      %v1396 = vpop.f32.mrf.mxu0
      %v1397 = vpop.f32.mrf.mxu0
      %v1398 = vadd.f32 0.0, %v1397
      %v1399 = vpop.f32.mrf.mxu0
      %1400 = vmatprep.mubr.bf16.mxu0 0
      %1401 = vmatmul.mubr.bf16.gmra.mxu0 %v590
      %v1402 = vpop.f32.mrf.mxu0
      %v1403 = vadd.f32 0.0, %v1402
      %v1404 = vpop.f32.mrf.mxu0
      %v1405 = vpop.f32.mrf.mxu0
      %v1406 = vadd.f32 0.0, %v1405
      %v1407 = vpop.f32.mrf.mxu0
      %1408 = vmatprep.mubr.bf16.mxu0 0
      %1409 = vmatmul.mubr.bf16.gmra.mxu0 %v591
      %v1410 = vpop.f32.mrf.mxu0
      %v1411 = vadd.f32 0.0, %v1410
      %v1412 = vpop.f32.mrf.mxu0
      %v1413 = vpop.f32.mrf.mxu0
      %v1414 = vadd.f32 0.0, %v1413
      %v1415 = vpop.f32.mrf.mxu0
      %1416 = vmatprep.mubr.bf16.mxu0 0
      %1417 = vmatmul.mubr.bf16.gmra.mxu0 %v592
      %v1418 = vpop.f32.mrf.mxu0
      %v1419 = vadd.f32 0.0, %v1418
      %v1420 = vpop.f32.mrf.mxu0
      %v1421 = vpop.f32.mrf.mxu0
      %v1422 = vadd.f32 0.0, %v1421
      %v1423 = vpop.f32.mrf.mxu0
      %1424 = vmatprep.mubr.bf16.mxu0 0
      %1425 = vmatmul.mubr.bf16.gmra.mxu0 %v593
      %v1426 = vpop.f32.mrf.mxu0
      %v1427 = vadd.f32 0.0, %v1426
      %v1428 = vpop.f32.mrf.mxu0
      %v1429 = vpop.f32.mrf.mxu0
      %v1430 = vadd.f32 0.0, %v1429
      %v1431 = vpop.f32.mrf.mxu0
      %1432 = vmatprep.mubr.bf16.mxu0 0
      %1433 = vmatmul.mubr.bf16.gmra.mxu0 %v594
      %v1434 = vpop.f32.mrf.mxu0
      %v1435 = vadd.f32 0.0, %v1434
      %v1436 = vpop.f32.mrf.mxu0
      %v1437 = vpop.f32.mrf.mxu0
      %v1438 = vadd.f32 0.0, %v1437
      %v1439 = vpop.f32.mrf.mxu0
      %1440 = vmatprep.mubr.bf16.mxu0 0
      %1441 = vmatmul.mubr.bf16.gmra.mxu0 %v595
      %v1442 = vpop.f32.mrf.mxu0
      %v1443 = vadd.f32 0.0, %v1442
      %v1444 = vpop.f32.mrf.mxu0
      %v1445 = vpop.f32.mrf.mxu0
      %v1446 = vadd.f32 0.0, %v1445
      %v1447 = vpop.f32.mrf.mxu0
      %1448 = vdwg.mxu0
      %1465 = vrot.lane.b32.xlu0 %v1387, 64
      %v1466 = vpop.permute.xlu0 %1465
      %1467 = vrot.lane.b32.xlu0 %v1390, 64
      %v1468 = vpop.permute.xlu0 %1467
      %1469 = vrot.lane.b32.xlu0 %v1395, 64
      %v1470 = vpop.permute.xlu0 %1469
      %1471 = vrot.lane.b32.xlu0 %v1398, 64
      %v1472 = vpop.permute.xlu0 %1471
      %1473 = vrot.lane.b32.xlu0 %v1403, 64
      %v1474 = vpop.permute.xlu0 %1473
      %1475 = vrot.lane.b32.xlu0 %v1406, 64
      %v1476 = vpop.permute.xlu0 %1475
      %1477 = vrot.lane.b32.xlu0 %v1411, 64
      %v1478 = vpop.permute.xlu0 %1477
      %1479 = vrot.lane.b32.xlu0 %v1414, 64
      %v1480 = vpop.permute.xlu0 %1479
      %1481 = vrot.lane.b32.xlu0 %v1419, 64
      %v1482 = vpop.permute.xlu0 %1481
      %1483 = vrot.lane.b32.xlu0 %v1422, 64
      %v1484 = vpop.permute.xlu0 %1483
      %1485 = vrot.lane.b32.xlu0 %v1427, 64
      %v1486 = vpop.permute.xlu0 %1485
      %1487 = vrot.lane.b32.xlu0 %v1430, 64
      %v1488 = vpop.permute.xlu0 %1487
      %1489 = vrot.lane.b32.xlu0 %v1435, 64
      %v1490 = vpop.permute.xlu0 %1489
      %1491 = vrot.lane.b32.xlu0 %v1438, 64
      %v1492 = vpop.permute.xlu0 %1491
      %1493 = vrot.lane.b32.xlu0 %v1443, 64
      %v1494 = vpop.permute.xlu0 %1493
      %1495 = vrot.lane.b32.xlu0 %v1446, 64
      %v1496 = vpop.permute.xlu0 %1495
      %v1513 = vsel %vm829, %v1328, %v1466
      %v1514 = vsel %vm829, %v1329, %v1468
      %v1515 = vsel %vm829, %v1330, %v1470
      %v1516 = vsel %vm829, %v1331, %v1472
      %v1517 = vsel %vm829, %v1332, %v1474
      %v1518 = vsel %vm829, %v1333, %v1476
      %v1519 = vsel %vm829, %v1334, %v1478
      %v1520 = vsel %vm829, %v1335, %v1480
      %v1521 = vsel %vm829, %v1336, %v1482
      %v1522 = vsel %vm829, %v1337, %v1484
      %v1523 = vsel %vm829, %v1338, %v1486
      %v1524 = vsel %vm829, %v1339, %v1488
      %v1525 = vsel %vm829, %v1340, %v1490
      %v1526 = vsel %vm829, %v1341, %v1492
      %v1527 = vsel %vm829, %v1342, %v1494
      %v1528 = vsel %vm829, %v1343, %v1496
      %v1529 = vpack.c.bf16 %v1514, %v1513
      %v1530 = vpack.c.bf16 %v1516, %v1515
      %v1531 = vpack.c.bf16 %v1518, %v1517
      %v1532 = vpack.c.bf16 %v1520, %v1519
      %v1533 = vpack.c.bf16 %v1522, %v1521
      %v1534 = vpack.c.bf16 %v1524, %v1523
      %v1535 = vpack.c.bf16 %v1526, %v1525
      %v1536 = vpack.c.bf16 %v1528, %v1527
      %v1537 = vld [vmem:[%s6] sm:$0xf]
      %v1538 = vld [vmem:[%s6 + $0x4] sm:$0xf]
      %v1539 = vld [vmem:[%s6 + $0x8] sm:$0xf]
      %v1540 = vld [vmem:[%s6 + $0xc] sm:$0xf]
      %v1541 = vld [vmem:[%s6 + $0x10] sm:$0xf]
      %v1542 = vld [vmem:[%s6 + $0x14] sm:$0xf]
      %v1543 = vld [vmem:[%s6 + $0x18] sm:$0xf]
      %v1544 = vld [vmem:[%s6 + $0x1c] sm:$0xf]
      %v1545 = vld [vmem:[%s6 + $0x20] sm:$0xf]
      %v1546 = vld [vmem:[%s6 + $0x24] sm:$0xf]
      %v1547 = vld [vmem:[%s6 + $0x28] sm:$0xf]
      %v1548 = vld [vmem:[%s6 + $0x2c] sm:$0xf]
      %v1549 = vld [vmem:[%s6 + $0x30] sm:$0xf]
      %v1550 = vld [vmem:[%s6 + $0x34] sm:$0xf]
      %v1551 = vld [vmem:[%s6 + $0x38] sm:$0xf]
      %v1552 = vld [vmem:[%s6 + $0x3c] sm:$0xf]
      %v1553 = vld [vmem:[%s7] sm:$0x1]
      %v1555 = vlaneseq
      %v1556 = vshrl.u32 %v1555, 7
      %v1557 = vsub.s32 0, %v1556
      %v1558 = vrot.slane %v1553, %v1557
      %v1576 = vunpack.c.l.b16 %v1537
      %v1577 = vunpack.c.l.b16 %v1538
      %v1578 = vunpack.c.l.b16 %v1539
      %v1579 = vunpack.c.l.b16 %v1540
      %v1580 = vunpack.c.l.b16 %v1541
      %v1581 = vunpack.c.l.b16 %v1542
      %v1582 = vunpack.c.l.b16 %v1543
      %v1583 = vunpack.c.l.b16 %v1544
      %v1584 = vunpack.c.l.b16 %v1545
      %v1585 = vunpack.c.l.b16 %v1546
      %v1586 = vunpack.c.l.b16 %v1547
      %v1587 = vunpack.c.l.b16 %v1548
      %v1588 = vunpack.c.l.b16 %v1549
      %v1589 = vunpack.c.l.b16 %v1550
      %v1590 = vunpack.c.l.b16 %v1551
      %v1591 = vunpack.c.l.b16 %v1552
      %v1592 = vpack.c.b16 %v1577, %v1576
      %v1593 = vpack.c.b16 %v1579, %v1578
      %v1594 = vpack.c.b16 %v1581, %v1580
      %v1595 = vpack.c.b16 %v1583, %v1582
      %v1596 = vpack.c.b16 %v1585, %v1584
      %v1597 = vpack.c.b16 %v1587, %v1586
      %v1598 = vpack.c.b16 %v1589, %v1588
      %v1599 = vpack.c.b16 %v1591, %v1590
      %1608 = vmatprep.subr.bf16.mxu0 0
      %1609 = vmatpush1.bf16.msra.mxu0 %v1599
      %1610 = vmatprep.subr.bf16.mxu0 0
      %1611 = vmatpush1.bf16.msra.mxu0 %v1598
      %1612 = vmatprep.subr.bf16.mxu0 0
      %1613 = vmatpush1.bf16.msra.mxu0 %v1597
      %1614 = vmatprep.subr.bf16.mxu0 0
      %1615 = vmatpush1.bf16.msra.mxu0 %v1596
      %1616 = vmatprep.subr.bf16.mxu0 0
      %1617 = vmatpush1.bf16.msra.mxu0 %v1595
      %1618 = vmatprep.subr.bf16.mxu0 0
      %1619 = vmatpush1.bf16.msra.mxu0 %v1594
      %1620 = vmatprep.subr.bf16.mxu0 0
      %1621 = vmatpush1.bf16.msra.mxu0 %v1593
      %1622 = vmatprep.subr.bf16.mxu0 0
      %1623 = vmatpush1.bf16.msra.mxu0 %v1592
      %1624 = vmatprep.subr.bf16.mxu0 0
      %1625 = vmatpush2.bf16.msra.mxu0 0
      %1626 = vmatprep.subr.bf16.mxu0 0
      %1627 = vmatpush2.bf16.msra.mxu0 0
      %1628 = vmatprep.subr.bf16.mxu0 0
      %1629 = vmatpush2.bf16.msra.mxu0 0
      %1630 = vmatprep.subr.bf16.mxu0 0
      %1631 = vmatpush2.bf16.msra.mxu0 0
      %1632 = vmatprep.subr.bf16.mxu0 0
      %1633 = vmatpush2.bf16.msra.mxu0 0
      %1634 = vmatprep.subr.bf16.mxu0 0
      %1635 = vmatpush2.bf16.msra.mxu0 0
      %1636 = vmatprep.subr.bf16.mxu0 0
      %1637 = vmatpush2.bf16.msra.mxu0 0
      %1638 = vmatprep.subr.bf16.mxu0 0
      %1639 = vmatpush2.bf16.msra.mxu0 0
      %1640 = vmatprep.mubr.bf16.mxu0 0
      %1641 = vmatmul.mubr.bf16.gmra.mxu0 %v1529
      %v1642 = vpop.f32.mrf.mxu0
      %v1643 = vadd.f32 %v1558, %v1642
      %v1644 = vpop.f32.mrf.mxu0
      %v1645 = vpop.f32.mrf.mxu0
      %v1646 = vadd.f32 %v1558, %v1645
      %v1647 = vpop.f32.mrf.mxu0
      %1648 = vmatprep.mubr.bf16.mxu0 0
      %1649 = vmatmul.mubr.bf16.gmra.mxu0 %v1530
      %v1650 = vpop.f32.mrf.mxu0
      %v1651 = vadd.f32 %v1558, %v1650
      %v1652 = vpop.f32.mrf.mxu0
      %v1653 = vpop.f32.mrf.mxu0
      %v1654 = vadd.f32 %v1558, %v1653
      %v1655 = vpop.f32.mrf.mxu0
      %1656 = vmatprep.mubr.bf16.mxu0 0
      %1657 = vmatmul.mubr.bf16.gmra.mxu0 %v1531
      %v1658 = vpop.f32.mrf.mxu0
      %v1659 = vadd.f32 %v1558, %v1658
      %v1660 = vpop.f32.mrf.mxu0
      %v1661 = vpop.f32.mrf.mxu0
      %v1662 = vadd.f32 %v1558, %v1661
      %v1663 = vpop.f32.mrf.mxu0
      %1664 = vmatprep.mubr.bf16.mxu0 0
      %1665 = vmatmul.mubr.bf16.gmra.mxu0 %v1532
      %v1666 = vpop.f32.mrf.mxu0
      %v1667 = vadd.f32 %v1558, %v1666
      %v1668 = vpop.f32.mrf.mxu0
      %v1669 = vpop.f32.mrf.mxu0
      %v1670 = vadd.f32 %v1558, %v1669
      %v1671 = vpop.f32.mrf.mxu0
      %1672 = vmatprep.mubr.bf16.mxu0 0
      %1673 = vmatmul.mubr.bf16.gmra.mxu0 %v1533
      %v1674 = vpop.f32.mrf.mxu0
      %v1675 = vadd.f32 %v1558, %v1674
      %v1676 = vpop.f32.mrf.mxu0
      %v1677 = vpop.f32.mrf.mxu0
      %v1678 = vadd.f32 %v1558, %v1677
      %v1679 = vpop.f32.mrf.mxu0
      %1680 = vmatprep.mubr.bf16.mxu0 0
      %1681 = vmatmul.mubr.bf16.gmra.mxu0 %v1534
      %v1682 = vpop.f32.mrf.mxu0
      %v1683 = vadd.f32 %v1558, %v1682
      %v1684 = vpop.f32.mrf.mxu0
      %v1685 = vpop.f32.mrf.mxu0
      %v1686 = vadd.f32 %v1558, %v1685
      %v1687 = vpop.f32.mrf.mxu0
      %1688 = vmatprep.mubr.bf16.mxu0 0
      %1689 = vmatmul.mubr.bf16.gmra.mxu0 %v1535
      %v1690 = vpop.f32.mrf.mxu0
      %v1691 = vadd.f32 %v1558, %v1690
      %v1692 = vpop.f32.mrf.mxu0
      %v1693 = vpop.f32.mrf.mxu0
      %v1694 = vadd.f32 %v1558, %v1693
      %v1695 = vpop.f32.mrf.mxu0
      %1696 = vmatprep.mubr.bf16.mxu0 0
      %1697 = vmatmul.mubr.bf16.gmra.mxu0 %v1536
      %v1698 = vpop.f32.mrf.mxu0
      %v1699 = vadd.f32 %v1558, %v1698
      %v1700 = vpop.f32.mrf.mxu0
      %v1701 = vpop.f32.mrf.mxu0
      %v1702 = vadd.f32 %v1558, %v1701
      %v1703 = vpop.f32.mrf.mxu0
      %1704 = vdwg.mxu0
      %v1705 = vmax.f32 %v1643, 0.0
      %v1706 = vmax.f32 %v1646, 0.0
      %v1707 = vmax.f32 %v1651, 0.0
      %v1708 = vmax.f32 %v1654, 0.0
      %v1709 = vmax.f32 %v1659, 0.0
      %v1710 = vmax.f32 %v1662, 0.0
      %v1711 = vmax.f32 %v1667, 0.0
      %v1712 = vmax.f32 %v1670, 0.0
      %v1713 = vmax.f32 %v1675, 0.0
      %v1714 = vmax.f32 %v1678, 0.0
      %v1715 = vmax.f32 %v1683, 0.0
      %v1716 = vmax.f32 %v1686, 0.0
      %v1717 = vmax.f32 %v1691, 0.0
      %v1718 = vmax.f32 %v1694, 0.0
      %v1719 = vmax.f32 %v1699, 0.0
      %v1720 = vmax.f32 %v1702, 0.0
      %v1721 = vpack.c.bf16 %v1706, %v1705
      %v1722 = vpack.c.bf16 %v1708, %v1707
      %v1723 = vpack.c.bf16 %v1710, %v1709
      %v1724 = vpack.c.bf16 %v1712, %v1711
      %v1725 = vpack.c.bf16 %v1714, %v1713
      %v1726 = vpack.c.bf16 %v1716, %v1715
      %v1727 = vpack.c.bf16 %v1718, %v1717
      %v1728 = vpack.c.bf16 %v1720, %v1719
      %1729 = vmatprep.subr.bf16.mxu0 0
      %1730 = vmatpush1.bf16.msra.mxu0 %v1728
      %1731 = vmatprep.subr.bf16.mxu0 0
      %1732 = vmatpush1.bf16.msra.mxu0 %v1727
      %1733 = vmatprep.subr.bf16.mxu0 0
      %1734 = vmatpush1.bf16.msra.mxu0 %v1726
      %1735 = vmatprep.subr.bf16.mxu0 0
      %1736 = vmatpush1.bf16.msra.mxu0 %v1725
      %1737 = vmatprep.subr.bf16.mxu0 0
      %1738 = vmatpush1.bf16.msra.mxu0 %v1724
      %1739 = vmatprep.subr.bf16.mxu0 0
      %1740 = vmatpush1.bf16.msra.mxu0 %v1723
      %1741 = vmatprep.subr.bf16.mxu0 0
      %1742 = vmatpush1.bf16.msra.mxu0 %v1722
      %1743 = vmatprep.subr.bf16.mxu0 0
      %1744 = vmatpush1.bf16.msra.mxu0 %v1721
      %1745 = vmatprep.subr.bf16.mxu0 0
      %1746 = vmatpush2.bf16.msra.mxu0 0
      %1747 = vmatprep.subr.bf16.mxu0 0
      %1748 = vmatpush2.bf16.msra.mxu0 0
      %1749 = vmatprep.subr.bf16.mxu0 0
      %1750 = vmatpush2.bf16.msra.mxu0 0
      %1751 = vmatprep.subr.bf16.mxu0 0
      %1752 = vmatpush2.bf16.msra.mxu0 0
      %1753 = vmatprep.subr.bf16.mxu0 0
      %1754 = vmatpush2.bf16.msra.mxu0 0
      %1755 = vmatprep.subr.bf16.mxu0 0
      %1756 = vmatpush2.bf16.msra.mxu0 0
      %1757 = vmatprep.subr.bf16.mxu0 0
      %1758 = vmatpush2.bf16.msra.mxu0 0
      %1759 = vmatprep.subr.bf16.mxu0 0
      %1760 = vmatpush2.bf16.msra.mxu0 0
      %1761 = vmatprep.mubr.bf16.mxu0 0
      %1762 = vmatmul.mubr.bf16.gmra.mxu0 %v588
      %v1763 = vpop.f32.mrf.mxu0
      %v1764 = vadd.f32 0.0, %v1763
      %v1765 = vpop.f32.mrf.mxu0
      %v1766 = vpop.f32.mrf.mxu0
      %v1767 = vadd.f32 0.0, %v1766
      %v1768 = vpop.f32.mrf.mxu0
      %1769 = vmatprep.mubr.bf16.mxu0 0
      %1770 = vmatmul.mubr.bf16.gmra.mxu0 %v589
      %v1771 = vpop.f32.mrf.mxu0
      %v1772 = vadd.f32 0.0, %v1771
      %v1773 = vpop.f32.mrf.mxu0
      %v1774 = vpop.f32.mrf.mxu0
      %v1775 = vadd.f32 0.0, %v1774
      %v1776 = vpop.f32.mrf.mxu0
      %1777 = vmatprep.mubr.bf16.mxu0 0
      %1778 = vmatmul.mubr.bf16.gmra.mxu0 %v590
      %v1779 = vpop.f32.mrf.mxu0
      %v1780 = vadd.f32 0.0, %v1779
      %v1781 = vpop.f32.mrf.mxu0
      %v1782 = vpop.f32.mrf.mxu0
      %v1783 = vadd.f32 0.0, %v1782
      %v1784 = vpop.f32.mrf.mxu0
      %1785 = vmatprep.mubr.bf16.mxu0 0
      %1786 = vmatmul.mubr.bf16.gmra.mxu0 %v591
      %v1787 = vpop.f32.mrf.mxu0
      %v1788 = vadd.f32 0.0, %v1787
      %v1789 = vpop.f32.mrf.mxu0
      %v1790 = vpop.f32.mrf.mxu0
      %v1791 = vadd.f32 0.0, %v1790
      %v1792 = vpop.f32.mrf.mxu0
      %1793 = vmatprep.mubr.bf16.mxu0 0
      %1794 = vmatmul.mubr.bf16.gmra.mxu0 %v592
      %v1795 = vpop.f32.mrf.mxu0
      %v1796 = vadd.f32 0.0, %v1795
      %v1797 = vpop.f32.mrf.mxu0
      %v1798 = vpop.f32.mrf.mxu0
      %v1799 = vadd.f32 0.0, %v1798
      %v1800 = vpop.f32.mrf.mxu0
      %1801 = vmatprep.mubr.bf16.mxu0 0
      %1802 = vmatmul.mubr.bf16.gmra.mxu0 %v593
      %v1803 = vpop.f32.mrf.mxu0
      %v1804 = vadd.f32 0.0, %v1803
      %v1805 = vpop.f32.mrf.mxu0
      %v1806 = vpop.f32.mrf.mxu0
      %v1807 = vadd.f32 0.0, %v1806
      %v1808 = vpop.f32.mrf.mxu0
      %1809 = vmatprep.mubr.bf16.mxu0 0
      %1810 = vmatmul.mubr.bf16.gmra.mxu0 %v594
      %v1811 = vpop.f32.mrf.mxu0
      %v1812 = vadd.f32 0.0, %v1811
      %v1813 = vpop.f32.mrf.mxu0
      %v1814 = vpop.f32.mrf.mxu0
      %v1815 = vadd.f32 0.0, %v1814
      %v1816 = vpop.f32.mrf.mxu0
      %1817 = vmatprep.mubr.bf16.mxu0 0
      %1818 = vmatmul.mubr.bf16.gmra.mxu0 %v595
      %v1819 = vpop.f32.mrf.mxu0
      %v1820 = vadd.f32 0.0, %v1819
      %v1821 = vpop.f32.mrf.mxu0
      %v1822 = vpop.f32.mrf.mxu0
      %v1823 = vadd.f32 0.0, %v1822
      %v1824 = vpop.f32.mrf.mxu0
      %1825 = vdwg.mxu0
      %1842 = vrot.lane.b32.xlu0 %v1764, 32
      %v1843 = vpop.permute.xlu0 %1842
      %1844 = vrot.lane.b32.xlu0 %v1767, 32
      %v1845 = vpop.permute.xlu0 %1844
      %1846 = vrot.lane.b32.xlu0 %v1772, 32
      %v1847 = vpop.permute.xlu0 %1846
      %1848 = vrot.lane.b32.xlu0 %v1775, 32
      %v1849 = vpop.permute.xlu0 %1848
      %1850 = vrot.lane.b32.xlu0 %v1780, 32
      %v1851 = vpop.permute.xlu0 %1850
      %1852 = vrot.lane.b32.xlu0 %v1783, 32
      %v1853 = vpop.permute.xlu0 %1852
      %1854 = vrot.lane.b32.xlu0 %v1788, 32
      %v1855 = vpop.permute.xlu0 %1854
      %1856 = vrot.lane.b32.xlu0 %v1791, 32
      %v1857 = vpop.permute.xlu0 %1856
      %1858 = vrot.lane.b32.xlu0 %v1796, 32
      %v1859 = vpop.permute.xlu0 %1858
      %1860 = vrot.lane.b32.xlu0 %v1799, 32
      %v1861 = vpop.permute.xlu0 %1860
      %1862 = vrot.lane.b32.xlu0 %v1804, 32
      %v1863 = vpop.permute.xlu0 %1862
      %1864 = vrot.lane.b32.xlu0 %v1807, 32
      %v1865 = vpop.permute.xlu0 %1864
      %1866 = vrot.lane.b32.xlu0 %v1812, 32
      %v1867 = vpop.permute.xlu0 %1866
      %1868 = vrot.lane.b32.xlu0 %v1815, 32
      %v1869 = vpop.permute.xlu0 %1868
      %1870 = vrot.lane.b32.xlu0 %v1820, 32
      %v1871 = vpop.permute.xlu0 %1870
      %1872 = vrot.lane.b32.xlu0 %v1823, 32
      %v1873 = vpop.permute.xlu0 %1872
      %v1890 = vsel %vm765, %v1705, %v1843
      %v1891 = vsel %vm765, %v1706, %v1845
      %v1892 = vsel %vm765, %v1707, %v1847
      %v1893 = vsel %vm765, %v1708, %v1849
      %v1894 = vsel %vm765, %v1709, %v1851
      %v1895 = vsel %vm765, %v1710, %v1853
      %v1896 = vsel %vm765, %v1711, %v1855
      %v1897 = vsel %vm765, %v1712, %v1857
      %v1898 = vsel %vm765, %v1713, %v1859
      %v1899 = vsel %vm765, %v1714, %v1861
      %v1900 = vsel %vm765, %v1715, %v1863
      %v1901 = vsel %vm765, %v1716, %v1865
      %v1902 = vsel %vm765, %v1717, %v1867
      %v1903 = vsel %vm765, %v1718, %v1869
      %v1904 = vsel %vm765, %v1719, %v1871
      %v1905 = vsel %vm765, %v1720, %v1873
      %v1906 = vpack.c.bf16 %v1891, %v1890
      %v1907 = vpack.c.bf16 %v1893, %v1892
      %v1908 = vpack.c.bf16 %v1895, %v1894
      %v1909 = vpack.c.bf16 %v1897, %v1896
      %v1910 = vpack.c.bf16 %v1899, %v1898
      %v1911 = vpack.c.bf16 %v1901, %v1900
      %v1912 = vpack.c.bf16 %v1903, %v1902
      %v1913 = vpack.c.bf16 %v1905, %v1904
      %v1914 = vld [vmem:[%s8] sm:$0xf]
      %v1915 = vld [vmem:[%s8 + $0x4] sm:$0xf]
      %v1916 = vld [vmem:[%s8 + $0x8] sm:$0xf]
      %v1917 = vld [vmem:[%s8 + $0xc] sm:$0xf]
      %v1918 = vld [vmem:[%s8 + $0x10] sm:$0xf]
      %v1919 = vld [vmem:[%s8 + $0x14] sm:$0xf]
      %v1920 = vld [vmem:[%s8 + $0x18] sm:$0xf]
      %v1921 = vld [vmem:[%s8 + $0x1c] sm:$0xf]
      %v1922 = vld [vmem:[%s9] sm:$0x1]
      %v1924 = vlaneseq
      %v1925 = vshrl.u32 %v1924, 7
      %v1926 = vsub.s32 0, %v1925
      %v1927 = vrot.slane %v1922, %v1926
      %v1937 = vunpack.c.l.b16 %v1914
      %v1938 = vunpack.c.l.b16 %v1915
      %v1939 = vunpack.c.l.b16 %v1916
      %v1940 = vunpack.c.l.b16 %v1917
      %v1941 = vunpack.c.l.b16 %v1918
      %v1942 = vunpack.c.l.b16 %v1919
      %v1943 = vunpack.c.l.b16 %v1920
      %v1944 = vunpack.c.l.b16 %v1921
      %v1945 = vpack.c.b16 %v1938, %v1937
      %v1946 = vpack.c.b16 %v1940, %v1939
      %v1947 = vpack.c.b16 %v1942, %v1941
      %v1948 = vpack.c.b16 %v1944, %v1943
      %v1954 = vsel %vm829, %v1906, 0
      %v1957 = vsel %vm829, %v1907, 0
      %v1960 = vsel %vm829, %v1908, 0
      %v1963 = vsel %vm829, %v1909, 0
      %v1966 = vsel %vm829, %v1910, 0
      %v1969 = vsel %vm829, %v1911, 0
      %v1972 = vsel %vm829, %v1912, 0
      %v1975 = vsel %vm829, %v1913, 0
      %1977 = vmatprep.subr.bf16.mxu0 0
      %1978 = vmatpush1.bf16.msra.mxu0 0
      %1979 = vmatprep.subr.bf16.mxu0 0
      %1980 = vmatpush1.bf16.msra.mxu0 0
      %1981 = vmatprep.subr.bf16.mxu0 0
      %1982 = vmatpush1.bf16.msra.mxu0 0
      %1983 = vmatprep.subr.bf16.mxu0 0
      %1984 = vmatpush1.bf16.msra.mxu0 0
      %1985 = vmatprep.subr.bf16.mxu0 0
      %1986 = vmatpush1.bf16.msra.mxu0 %v1948
      %1987 = vmatprep.subr.bf16.mxu0 0
      %1988 = vmatpush1.bf16.msra.mxu0 %v1947
      %1989 = vmatprep.subr.bf16.mxu0 0
      %1990 = vmatpush1.bf16.msra.mxu0 %v1946
      %1991 = vmatprep.subr.bf16.mxu0 0
      %1992 = vmatpush1.bf16.msra.mxu0 %v1945
      %1993 = vmatprep.subr.bf16.mxu0 0
      %1994 = vmatpush2.bf16.msra.mxu0 0
      %1995 = vmatprep.subr.bf16.mxu0 0
      %1996 = vmatpush2.bf16.msra.mxu0 0
      %1997 = vmatprep.subr.bf16.mxu0 0
      %1998 = vmatpush2.bf16.msra.mxu0 0
      %1999 = vmatprep.subr.bf16.mxu0 0
      %2000 = vmatpush2.bf16.msra.mxu0 0
      %2001 = vmatprep.subr.bf16.mxu0 0
      %2002 = vmatpush2.bf16.msra.mxu0 0
      %2003 = vmatprep.subr.bf16.mxu0 0
      %2004 = vmatpush2.bf16.msra.mxu0 0
      %2005 = vmatprep.subr.bf16.mxu0 0
      %2006 = vmatpush2.bf16.msra.mxu0 0
      %2007 = vmatprep.subr.bf16.mxu0 0
      %2008 = vmatpush2.bf16.msra.mxu0 0
      %2009 = vmatprep.mubr.bf16.mxu0 0
      %2010 = vmatmul.mubr.bf16.gmra.mxu0 %v1954
      %v2011 = vpop.f32.mrf.mxu0
      %v2012 = vadd.f32 %v1927, %v2011
      %v2013 = vpop.f32.mrf.mxu0
      %v2014 = vpop.f32.mrf.mxu0
      %v2015 = vadd.f32 %v1927, %v2014
      %v2016 = vpop.f32.mrf.mxu0
      %2017 = vmatprep.mubr.bf16.mxu0 0
      %2018 = vmatmul.mubr.bf16.gmra.mxu0 %v1957
      %v2019 = vpop.f32.mrf.mxu0
      %v2020 = vadd.f32 %v1927, %v2019
      %v2021 = vpop.f32.mrf.mxu0
      %v2022 = vpop.f32.mrf.mxu0
      %v2023 = vadd.f32 %v1927, %v2022
      %v2024 = vpop.f32.mrf.mxu0
      %2025 = vmatprep.mubr.bf16.mxu0 0
      %2026 = vmatmul.mubr.bf16.gmra.mxu0 %v1960
      %v2027 = vpop.f32.mrf.mxu0
      %v2028 = vadd.f32 %v1927, %v2027
      %v2029 = vpop.f32.mrf.mxu0
      %v2030 = vpop.f32.mrf.mxu0
      %v2031 = vadd.f32 %v1927, %v2030
      %v2032 = vpop.f32.mrf.mxu0
      %2033 = vmatprep.mubr.bf16.mxu0 0
      %2034 = vmatmul.mubr.bf16.gmra.mxu0 %v1963
      %v2035 = vpop.f32.mrf.mxu0
      %v2036 = vadd.f32 %v1927, %v2035
      %v2037 = vpop.f32.mrf.mxu0
      %v2038 = vpop.f32.mrf.mxu0
      %v2039 = vadd.f32 %v1927, %v2038
      %v2040 = vpop.f32.mrf.mxu0
      %2041 = vmatprep.mubr.bf16.mxu0 0
      %2042 = vmatmul.mubr.bf16.gmra.mxu0 %v1966
      %v2043 = vpop.f32.mrf.mxu0
      %v2044 = vadd.f32 %v1927, %v2043
      %v2045 = vpop.f32.mrf.mxu0
      %v2046 = vpop.f32.mrf.mxu0
      %v2047 = vadd.f32 %v1927, %v2046
      %v2048 = vpop.f32.mrf.mxu0
      %2049 = vmatprep.mubr.bf16.mxu0 0
      %2050 = vmatmul.mubr.bf16.gmra.mxu0 %v1969
      %v2051 = vpop.f32.mrf.mxu0
      %v2052 = vadd.f32 %v1927, %v2051
      %v2053 = vpop.f32.mrf.mxu0
      %v2054 = vpop.f32.mrf.mxu0
      %v2055 = vadd.f32 %v1927, %v2054
      %v2056 = vpop.f32.mrf.mxu0
      %2057 = vmatprep.mubr.bf16.mxu0 0
      %2058 = vmatmul.mubr.bf16.gmra.mxu0 %v1972
      %v2059 = vpop.f32.mrf.mxu0
      %v2060 = vadd.f32 %v1927, %v2059
      %v2061 = vpop.f32.mrf.mxu0
      %v2062 = vpop.f32.mrf.mxu0
      %v2063 = vadd.f32 %v1927, %v2062
      %v2064 = vpop.f32.mrf.mxu0
      %2065 = vmatprep.mubr.bf16.mxu0 0
      %2066 = vmatmul.mubr.bf16.gmra.mxu0 %v1975
      %v2067 = vpop.f32.mrf.mxu0
      %v2068 = vadd.f32 %v1927, %v2067
      %v2069 = vpop.f32.mrf.mxu0
      %v2070 = vpop.f32.mrf.mxu0
      %v2071 = vadd.f32 %v1927, %v2070
      %v2072 = vpop.f32.mrf.mxu0
      %2073 = vdwg.mxu0
      %v2074 = vmax.f32 %v2012, 0.0
      %v2075 = vmax.f32 %v2015, 0.0
      %v2076 = vmax.f32 %v2020, 0.0
      %v2077 = vmax.f32 %v2023, 0.0
      %v2078 = vmax.f32 %v2028, 0.0
      %v2079 = vmax.f32 %v2031, 0.0
      %v2080 = vmax.f32 %v2036, 0.0
      %v2081 = vmax.f32 %v2039, 0.0
      %v2082 = vmax.f32 %v2044, 0.0
      %v2083 = vmax.f32 %v2047, 0.0
      %v2084 = vmax.f32 %v2052, 0.0
      %v2085 = vmax.f32 %v2055, 0.0
      %v2086 = vmax.f32 %v2060, 0.0
      %v2087 = vmax.f32 %v2063, 0.0
      %v2088 = vmax.f32 %v2068, 0.0
      %v2089 = vmax.f32 %v2071, 0.0
      %v2090 = vpack.c.bf16 %v2075, %v2074
      %v2091 = vpack.c.bf16 %v2077, %v2076
      %v2092 = vpack.c.bf16 %v2079, %v2078
      %v2093 = vpack.c.bf16 %v2081, %v2080
      %v2094 = vpack.c.bf16 %v2083, %v2082
      %v2095 = vpack.c.bf16 %v2085, %v2084
      %v2096 = vpack.c.bf16 %v2087, %v2086
      %v2097 = vpack.c.bf16 %v2089, %v2088
      %v2098 = vld [vmem:[%s10] sm:$0xf]
      %v2099 = vld [vmem:[%s10 + $0x4] sm:$0xf]
      %v2100 = vld [vmem:[%s10 + $0x8] sm:$0xf]
      %v2101 = vld [vmem:[%s10 + $0xc] sm:$0xf]
      %v2102 = vld [vmem:[%s11] sm:$0x1]
      %v2104 = vlaneseq
      %v2105 = vshrl.u32 %v2104, 7
      %v2106 = vsub.s32 0, %v2105
      %v2107 = vrot.slane %v2102, %v2106
      %v2113 = vunpack.c.l.b16 %v2098
      %v2114 = vunpack.c.l.b16 %v2099
      %v2115 = vunpack.c.l.b16 %v2100
      %v2116 = vunpack.c.l.b16 %v2101
      %v2117 = vpack.c.b16 %v2114, %v2113
      %v2118 = vpack.c.b16 %v2116, %v2115
      %v2122 = vsel %vm765, %v2090, 0
      %v2125 = vsel %vm765, %v2091, 0
      %v2128 = vsel %vm765, %v2092, 0
      %v2131 = vsel %vm765, %v2093, 0
      %v2134 = vsel %vm765, %v2094, 0
      %v2137 = vsel %vm765, %v2095, 0
      %v2140 = vsel %vm765, %v2096, 0
      %v2143 = vsel %vm765, %v2097, 0
      %2145 = vmatprep.subr.bf16.mxu0 0
      %2146 = vmatpush1.bf16.msra.mxu0 0
      %2147 = vmatprep.subr.bf16.mxu0 0
      %2148 = vmatpush1.bf16.msra.mxu0 0
      %2149 = vmatprep.subr.bf16.mxu0 0
      %2150 = vmatpush1.bf16.msra.mxu0 0
      %2151 = vmatprep.subr.bf16.mxu0 0
      %2152 = vmatpush1.bf16.msra.mxu0 0
      %2153 = vmatprep.subr.bf16.mxu0 0
      %2154 = vmatpush1.bf16.msra.mxu0 0
      %2155 = vmatprep.subr.bf16.mxu0 0
      %2156 = vmatpush1.bf16.msra.mxu0 0
      %2157 = vmatprep.subr.bf16.mxu0 0
      %2158 = vmatpush1.bf16.msra.mxu0 %v2118
      %2159 = vmatprep.subr.bf16.mxu0 0
      %2160 = vmatpush1.bf16.msra.mxu0 %v2117
      %2161 = vmatprep.subr.bf16.mxu0 0
      %2162 = vmatpush2.bf16.msra.mxu0 0
      %2163 = vmatprep.subr.bf16.mxu0 0
      %2164 = vmatpush2.bf16.msra.mxu0 0
      %2165 = vmatprep.subr.bf16.mxu0 0
      %2166 = vmatpush2.bf16.msra.mxu0 0
      %2167 = vmatprep.subr.bf16.mxu0 0
      %2168 = vmatpush2.bf16.msra.mxu0 0
      %2169 = vmatprep.subr.bf16.mxu0 0
      %2170 = vmatpush2.bf16.msra.mxu0 0
      %2171 = vmatprep.subr.bf16.mxu0 0
      %2172 = vmatpush2.bf16.msra.mxu0 0
      %2173 = vmatprep.subr.bf16.mxu0 0
      %2174 = vmatpush2.bf16.msra.mxu0 0
      %2175 = vmatprep.subr.bf16.mxu0 0
      %2176 = vmatpush2.bf16.msra.mxu0 0
      %2177 = vmatprep.mubr.bf16.mxu0 0
      %2178 = vmatmul.mubr.bf16.gmra.mxu0 %v2122
      %v2179 = vpop.f32.mrf.mxu0
      %v2180 = vadd.f32 %v2107, %v2179
      %v2181 = vpop.f32.mrf.mxu0
      %v2182 = vpop.f32.mrf.mxu0
      %v2183 = vadd.f32 %v2107, %v2182
      %v2184 = vpop.f32.mrf.mxu0
      %2185 = vmatprep.mubr.bf16.mxu0 0
      %2186 = vmatmul.mubr.bf16.gmra.mxu0 %v2125
      %v2187 = vpop.f32.mrf.mxu0
      %v2188 = vadd.f32 %v2107, %v2187
      %v2189 = vpop.f32.mrf.mxu0
      %v2190 = vpop.f32.mrf.mxu0
      %v2191 = vadd.f32 %v2107, %v2190
      %v2192 = vpop.f32.mrf.mxu0
      %2193 = vmatprep.mubr.bf16.mxu0 0
      %2194 = vmatmul.mubr.bf16.gmra.mxu0 %v2128
      %v2195 = vpop.f32.mrf.mxu0
      %v2196 = vadd.f32 %v2107, %v2195
      %v2197 = vpop.f32.mrf.mxu0
      %v2198 = vpop.f32.mrf.mxu0
      %v2199 = vadd.f32 %v2107, %v2198
      %v2200 = vpop.f32.mrf.mxu0
      %2201 = vmatprep.mubr.bf16.mxu0 0
      %2202 = vmatmul.mubr.bf16.gmra.mxu0 %v2131
      %v2203 = vpop.f32.mrf.mxu0
      %v2204 = vadd.f32 %v2107, %v2203
      %v2205 = vpop.f32.mrf.mxu0
      %v2206 = vpop.f32.mrf.mxu0
      %v2207 = vadd.f32 %v2107, %v2206
      %v2208 = vpop.f32.mrf.mxu0
      %2209 = vmatprep.mubr.bf16.mxu0 0
      %2210 = vmatmul.mubr.bf16.gmra.mxu0 %v2134
      %v2211 = vpop.f32.mrf.mxu0
      %v2212 = vadd.f32 %v2107, %v2211
      %v2213 = vpop.f32.mrf.mxu0
      %v2214 = vpop.f32.mrf.mxu0
      %v2215 = vadd.f32 %v2107, %v2214
      %v2216 = vpop.f32.mrf.mxu0
      %2217 = vmatprep.mubr.bf16.mxu0 0
      %2218 = vmatmul.mubr.bf16.gmra.mxu0 %v2137
      %v2219 = vpop.f32.mrf.mxu0
      %v2220 = vadd.f32 %v2107, %v2219
      %v2221 = vpop.f32.mrf.mxu0
      %v2222 = vpop.f32.mrf.mxu0
      %v2223 = vadd.f32 %v2107, %v2222
      %v2224 = vpop.f32.mrf.mxu0
      %2225 = vmatprep.mubr.bf16.mxu0 0
      %2226 = vmatmul.mubr.bf16.gmra.mxu0 %v2140
      %v2227 = vpop.f32.mrf.mxu0
      %v2228 = vadd.f32 %v2107, %v2227
      %v2229 = vpop.f32.mrf.mxu0
      %v2230 = vpop.f32.mrf.mxu0
      %v2231 = vadd.f32 %v2107, %v2230
      %v2232 = vpop.f32.mrf.mxu0
      %2233 = vmatprep.mubr.bf16.mxu0 0
      %2234 = vmatmul.mubr.bf16.gmra.mxu0 %v2143
      %v2235 = vpop.f32.mrf.mxu0
      %v2236 = vadd.f32 %v2107, %v2235
      %v2237 = vpop.f32.mrf.mxu0
      %v2238 = vpop.f32.mrf.mxu0
      %v2239 = vadd.f32 %v2107, %v2238
      %v2240 = vpop.f32.mrf.mxu0
      %2241 = vdwg.mxu0
      %vm2242 = vcmp.gt.f32.partialorder %v2180, 0.0
      %vm2243 = vcmp.gt.f32.partialorder %v2183, 0.0
      %vm2244 = vcmp.gt.f32.partialorder %v2188, 0.0
      %vm2245 = vcmp.gt.f32.partialorder %v2191, 0.0
      %vm2246 = vcmp.gt.f32.partialorder %v2196, 0.0
      %vm2247 = vcmp.gt.f32.partialorder %v2199, 0.0
      %vm2248 = vcmp.gt.f32.partialorder %v2204, 0.0
      %vm2249 = vcmp.gt.f32.partialorder %v2207, 0.0
      %vm2250 = vcmp.gt.f32.partialorder %v2212, 0.0
      %vm2251 = vcmp.gt.f32.partialorder %v2215, 0.0
      %vm2252 = vcmp.gt.f32.partialorder %v2220, 0.0
      %vm2253 = vcmp.gt.f32.partialorder %v2223, 0.0
      %vm2254 = vcmp.gt.f32.partialorder %v2228, 0.0
      %vm2255 = vcmp.gt.f32.partialorder %v2231, 0.0
      %vm2256 = vcmp.gt.f32.partialorder %v2236, 0.0
      %vm2257 = vcmp.gt.f32.partialorder %v2239, 0.0
      %v2258 = vld [vmem:[%s12] sm:$0x1]
      %v2260 = vlaneseq
      %v2261 = vshrl.u32 %v2260, 7
      %v2262 = vsub.s32 0, %v2261
      %v2263 = vrot.slane %v2258, %v2262
      %v2265 = vmul.f32 %v2263, %v2180
      %v2266 = vmul.f32 %v2263, %v2183
      %v2267 = vmul.f32 %v2263, %v2188
      %v2268 = vmul.f32 %v2263, %v2191
      %v2269 = vmul.f32 %v2263, %v2196
      %v2270 = vmul.f32 %v2263, %v2199
      %v2271 = vmul.f32 %v2263, %v2204
      %v2272 = vmul.f32 %v2263, %v2207
      %v2273 = vmul.f32 %v2263, %v2212
      %v2274 = vmul.f32 %v2263, %v2215
      %v2275 = vmul.f32 %v2263, %v2220
      %v2276 = vmul.f32 %v2263, %v2223
      %v2277 = vmul.f32 %v2263, %v2228
      %v2278 = vmul.f32 %v2263, %v2231
      %v2279 = vmul.f32 %v2263, %v2236
      %v2280 = vmul.f32 %v2263, %v2239
      %v2281 = vsel %vm2242, %v2180, %v2265
      %v2282 = vsel %vm2243, %v2183, %v2266
      %v2283 = vsel %vm2244, %v2188, %v2267
      %v2284 = vsel %vm2245, %v2191, %v2268
      %v2285 = vsel %vm2246, %v2196, %v2269
      %v2286 = vsel %vm2247, %v2199, %v2270
      %v2287 = vsel %vm2248, %v2204, %v2271
      %v2288 = vsel %vm2249, %v2207, %v2272
      %v2289 = vsel %vm2250, %v2212, %v2273
      %v2290 = vsel %vm2251, %v2215, %v2274
      %v2291 = vsel %vm2252, %v2220, %v2275
      %v2292 = vsel %vm2253, %v2223, %v2276
      %v2293 = vsel %vm2254, %v2228, %v2277
      %v2294 = vsel %vm2255, %v2231, %v2278
      %v2295 = vsel %vm2256, %v2236, %v2279
      %v2296 = vsel %vm2257, %v2239, %v2280
      %v2297 = vpack.c.bf16 %v2282, %v2281
      %v2298 = vpack.c.bf16 %v2284, %v2283
      %v2299 = vpack.c.bf16 %v2286, %v2285
      %v2300 = vpack.c.bf16 %v2288, %v2287
      %v2301 = vpack.c.bf16 %v2290, %v2289
      %v2302 = vpack.c.bf16 %v2292, %v2291
      %v2303 = vpack.c.bf16 %v2294, %v2293
      %v2304 = vpack.c.bf16 %v2296, %v2295
      %v2305 = vld [vmem:[%s13] sm:$0xf]
      %v2306 = vld [vmem:[%s13 + $0x4] sm:$0xf]
      %v2307 = vld [vmem:[%s13 + $0x8] sm:$0xf]
      %v2308 = vld [vmem:[%s13 + $0xc] sm:$0xf]
      %v2309 = vld [vmem:[%s14] sm:$0x1]
      %v2311 = vlaneseq
      %v2312 = vshrl.u32 %v2311, 7
      %v2313 = vsub.s32 0, %v2312
      %v2314 = vrot.slane %v2309, %v2313
      %v2320 = vunpack.c.l.b16 %v2305
      %v2321 = vunpack.c.l.b16 %v2306
      %v2322 = vunpack.c.l.b16 %v2307
      %v2323 = vunpack.c.l.b16 %v2308
      %v2324 = vpack.c.b16 %v2321, %v2320
      %v2325 = vpack.c.b16 %v2323, %v2322
      %v2329 = vsel %vm765, %v2297, 0
      %v2332 = vsel %vm765, %v2298, 0
      %v2335 = vsel %vm765, %v2299, 0
      %v2338 = vsel %vm765, %v2300, 0
      %v2341 = vsel %vm765, %v2301, 0
      %v2344 = vsel %vm765, %v2302, 0
      %v2347 = vsel %vm765, %v2303, 0
      %v2350 = vsel %vm765, %v2304, 0
      %2352 = vmatprep.subr.bf16.mxu0 0
      %2353 = vmatpush1.bf16.msra.mxu0 0
      %2354 = vmatprep.subr.bf16.mxu0 0
      %2355 = vmatpush1.bf16.msra.mxu0 0
      %2356 = vmatprep.subr.bf16.mxu0 0
      %2357 = vmatpush1.bf16.msra.mxu0 0
      %2358 = vmatprep.subr.bf16.mxu0 0
      %2359 = vmatpush1.bf16.msra.mxu0 0
      %2360 = vmatprep.subr.bf16.mxu0 0
      %2361 = vmatpush1.bf16.msra.mxu0 0
      %2362 = vmatprep.subr.bf16.mxu0 0
      %2363 = vmatpush1.bf16.msra.mxu0 0
      %2364 = vmatprep.subr.bf16.mxu0 0
      %2365 = vmatpush1.bf16.msra.mxu0 %v2325
      %2366 = vmatprep.subr.bf16.mxu0 0
      %2367 = vmatpush1.bf16.msra.mxu0 %v2324
      %2368 = vmatprep.subr.bf16.mxu0 0
      %2369 = vmatpush2.bf16.msra.mxu0 0
      %2370 = vmatprep.subr.bf16.mxu0 0
      %2371 = vmatpush2.bf16.msra.mxu0 0
      %2372 = vmatprep.subr.bf16.mxu0 0
      %2373 = vmatpush2.bf16.msra.mxu0 0
      %2374 = vmatprep.subr.bf16.mxu0 0
      %2375 = vmatpush2.bf16.msra.mxu0 0
      %2376 = vmatprep.subr.bf16.mxu0 0
      %2377 = vmatpush2.bf16.msra.mxu0 0
      %2378 = vmatprep.subr.bf16.mxu0 0
      %2379 = vmatpush2.bf16.msra.mxu0 0
      %2380 = vmatprep.subr.bf16.mxu0 0
      %2381 = vmatpush2.bf16.msra.mxu0 0
      %2382 = vmatprep.subr.bf16.mxu0 0
      %2383 = vmatpush2.bf16.msra.mxu0 0
      %2384 = vmatprep.mubr.bf16.mxu0 0
      %2385 = vmatmul.mubr.bf16.gmra.mxu0 %v2329
      %v2386 = vpop.f32.mrf.mxu0
      %v2387 = vadd.f32 %v2314, %v2386
      %v2388 = vpop.f32.mrf.mxu0
      %v2389 = vpop.f32.mrf.mxu0
      %v2390 = vadd.f32 %v2314, %v2389
      %v2391 = vpop.f32.mrf.mxu0
      %2392 = vmatprep.mubr.bf16.mxu0 0
      %2393 = vmatmul.mubr.bf16.gmra.mxu0 %v2332
      %v2394 = vpop.f32.mrf.mxu0
      %v2395 = vadd.f32 %v2314, %v2394
      %v2396 = vpop.f32.mrf.mxu0
      %v2397 = vpop.f32.mrf.mxu0
      %v2398 = vadd.f32 %v2314, %v2397
      %v2399 = vpop.f32.mrf.mxu0
      %2400 = vmatprep.mubr.bf16.mxu0 0
      %2401 = vmatmul.mubr.bf16.gmra.mxu0 %v2335
      %v2402 = vpop.f32.mrf.mxu0
      %v2403 = vadd.f32 %v2314, %v2402
      %v2404 = vpop.f32.mrf.mxu0
      %v2405 = vpop.f32.mrf.mxu0
      %v2406 = vadd.f32 %v2314, %v2405
      %v2407 = vpop.f32.mrf.mxu0
      %2408 = vmatprep.mubr.bf16.mxu0 0
      %2409 = vmatmul.mubr.bf16.gmra.mxu0 %v2338
      %v2410 = vpop.f32.mrf.mxu0
      %v2411 = vadd.f32 %v2314, %v2410
      %v2412 = vpop.f32.mrf.mxu0
      %v2413 = vpop.f32.mrf.mxu0
      %v2414 = vadd.f32 %v2314, %v2413
      %v2415 = vpop.f32.mrf.mxu0
      %2416 = vmatprep.mubr.bf16.mxu0 0
      %2417 = vmatmul.mubr.bf16.gmra.mxu0 %v2341
      %v2418 = vpop.f32.mrf.mxu0
      %v2419 = vadd.f32 %v2314, %v2418
      %v2420 = vpop.f32.mrf.mxu0
      %v2421 = vpop.f32.mrf.mxu0
      %v2422 = vadd.f32 %v2314, %v2421
      %v2423 = vpop.f32.mrf.mxu0
      %2424 = vmatprep.mubr.bf16.mxu0 0
      %2425 = vmatmul.mubr.bf16.gmra.mxu0 %v2344
      %v2426 = vpop.f32.mrf.mxu0
      %v2427 = vadd.f32 %v2314, %v2426
      %v2428 = vpop.f32.mrf.mxu0
      %v2429 = vpop.f32.mrf.mxu0
      %v2430 = vadd.f32 %v2314, %v2429
      %v2431 = vpop.f32.mrf.mxu0
      %2432 = vmatprep.mubr.bf16.mxu0 0
      %2433 = vmatmul.mubr.bf16.gmra.mxu0 %v2347
      %v2434 = vpop.f32.mrf.mxu0
      %v2435 = vadd.f32 %v2314, %v2434
      %v2436 = vpop.f32.mrf.mxu0
      %v2437 = vpop.f32.mrf.mxu0
      %v2438 = vadd.f32 %v2314, %v2437
      %v2439 = vpop.f32.mrf.mxu0
      %2440 = vmatprep.mubr.bf16.mxu0 0
      %2441 = vmatmul.mubr.bf16.gmra.mxu0 %v2350
      %v2442 = vpop.f32.mrf.mxu0
      %v2443 = vadd.f32 %v2314, %v2442
      %v2444 = vpop.f32.mrf.mxu0
      %v2445 = vpop.f32.mrf.mxu0
      %v2446 = vadd.f32 %v2314, %v2445
      %v2447 = vpop.f32.mrf.mxu0
      %2448 = vdwg.mxu0
      %vm2449 = vcmask 15360
      %2450 = vst.msk [vmem:[%s514] sm:$0xff] %vm2449, %v2387
      %2451 = vst.msk [vmem:[%s514 + $0x8] sm:$0xff] %vm2449, %v2390
      %2452 = vst.msk [vmem:[%s514 + $0x10] sm:$0xff] %vm2449, %v2395
      %2453 = vst.msk [vmem:[%s514 + $0x18] sm:$0xff] %vm2449, %v2398
      %2454 = vst.msk [vmem:[%s514 + $0x20] sm:$0xff] %vm2449, %v2403
      %2455 = vst.msk [vmem:[%s514 + $0x28] sm:$0xff] %vm2449, %v2406
      %2456 = vst.msk [vmem:[%s514 + $0x30] sm:$0xff] %vm2449, %v2411
      %2457 = vst.msk [vmem:[%s514 + $0x38] sm:$0xff] %vm2449, %v2414
      %2458 = vst.msk [vmem:[%s514 + $0x40] sm:$0xff] %vm2449, %v2419
      %2459 = vst.msk [vmem:[%s514 + $0x48] sm:$0xff] %vm2449, %v2422
      %2460 = vst.msk [vmem:[%s514 + $0x50] sm:$0xff] %vm2449, %v2427
      %2461 = vst.msk [vmem:[%s514 + $0x58] sm:$0xff] %vm2449, %v2430
      %2462 = vst.msk [vmem:[%s514 + $0x60] sm:$0xff] %vm2449, %v2435
      %2463 = vst.msk [vmem:[%s514 + $0x68] sm:$0xff] %vm2449, %v2438
      %2464 = vst.msk [vmem:[%s514 + $0x70] sm:$0xff] %vm2449, %v2443
      %2465 = vst.msk [vmem:[%s514 + $0x78] sm:$0xff] %vm2449, %v2446
      %p2466 = scmp.lt.s32.totalorder %s26, 1
      %s2467 = scalar_select %p2466, %s26, 1
      %s2468 = smul.addr %s2467, 16
      %s2469 = smul.addr %s2468, 8
      %s2470 = scalar_lea.vmem %s15, %s2469
      // Predicated region
      $region81: #{gcn_e_forward.1} parent=79 // pred_check
        %p2471 = pneg %p369
      $region82: #{gcn_e_forward.1} parent=79 // pred_check_branch
        %2473 = sbr.rel (%p2471) target = $region84
      $region83: #{gcn_e_forward.1} parent=79 // pred_region
        _
      $region84: #{gcn_e_forward.1} parent=79 // pred_fallthru
        _
    $region80: #{gcn_e_forward.1} parent=5 // pred_fallthru
      _
    %p2474 = scmp.le.s32.totalorder 2, %s21
    // Predicated region
    $region85: #{gcn_e_forward.1} parent=5 // pred_check
      %p2475 = pneg %p2474
    $region86: #{gcn_e_forward.1} parent=5 // pred_check_branch
      %2477 = sbr.rel (%p2475) target = $region88
    $region87: #{gcn_e_forward.1} parent=5 // pred_region
      %s2478 = ssub.s32 %s21, 2
      // Predicated region
      $region89: #{gcn_e_forward.1} parent=87 // pred_check
        %p2479 = pneg %p375
      $region90: #{gcn_e_forward.1} parent=87 // pred_check_branch
        %2481 = sbr.rel (%p2479) target = $region92
      $region91: #{gcn_e_forward.1} parent=87 // pred_region
        %p2482 = scmp.lt.s32.totalorder %s27, 1
        %s2483 = scalar_select %p2482, %s27, 1
        %s2484 = smul.addr %s2483, 16
        %s2485 = smul.addr %s2484, 8
        %s2486 = scalar_lea.vmem %s15, %s2485
      $region92: #{gcn_e_forward.1} parent=87 // pred_fallthru
        _
    $region88: #{gcn_e_forward.1} parent=5 // pred_fallthru
      _
  $region6: #{gcn_e_forward.1} parent=0 // loop_footer
    %s25 = sadd.s32 1, %s21
  $region7: #{gcn_e_forward.1} parent=0 // loop_footer_branch
    %20 = sbr.rel target = $region3
  $region8: #{gcn_e_forward.1} parent=0 // loop_exit
    _

</llo_original>
